<compile_context>
chip_gen: v6e
topology: v6e:2x2x1
jax: 0.10.0
libtpu: 0.0.40
codegen_flags: <defaults>
</compile_context>

<pallas_src>
import jax
import jax.numpy as jnp
from jax import lax
from jax.experimental import pallas as pl
from jax.experimental.pallas import tpu as pltpu

EPS = 1e-5


def resblock_kernel(x_ref, w1_ref, w2_ref, p_ref,
                    g1_ref, be1_ref, g2_ref, be2_ref,
                    out_ref, hpad_ref):
    N, H, WC = out_ref.shape
    NH = N * H

    x = x_ref[...]                                   # (N, H, W*C) f32, lane-dense

    # --- ReLU + zero padding along H into VMEM scratch (relu(0) == 0, and the
    #     W-direction padding is encoded in the banded conv weights). ---
    zrow = jnp.zeros((N, 1, WC), jnp.float32)
    hpad_ref[:, pl.ds(0, 1), :] = zrow
    hpad_ref[:, pl.ds(H + 1, 1), :] = zrow
    hpad_ref[:, pl.ds(1, H), :] = jnp.maximum(x, 0.0)

    # --- Conv2d(dim, dim, 3, stride=1, pad=1): 3 lane-dense MXU matmuls, K = W*C.
    #     Conv bias omitted: it cancels exactly with BN1's batch-mean subtraction. ---
    acc = jnp.dot(hpad_ref[:, pl.ds(0, H), :].reshape(NH, WC), w1_ref[0],
                  preferred_element_type=jnp.float32)
    for dy in (1, 2):
        acc += jnp.dot(hpad_ref[:, pl.ds(dy, H), :].reshape(NH, WC), w1_ref[dy],
                       preferred_element_type=jnp.float32)

    ones_row = jnp.ones((1, NH), jnp.float32)        # MXU row-reduction (MXU has slack)
    p = p_ref[...]                                   # (W*C, W*C) per-channel mean matrix
                                                     # (collapse over w + broadcast, /NHW)

    def batchnorm(v, g_l, be_l):
        # one-pass batch stats (f32 accumulation), fused scale/shift FMA
        mu_l = jnp.dot(jnp.dot(ones_row, v, preferred_element_type=jnp.float32), p,
                       preferred_element_type=jnp.float32)            # E[x]  per channel
        ex2_l = jnp.dot(jnp.dot(ones_row, v * v, preferred_element_type=jnp.float32), p,
                        preferred_element_type=jnp.float32)           # E[x^2] per channel
        var_l = ex2_l - mu_l * mu_l
        a_l = g_l * lax.rsqrt(var_l + EPS)
        b_l = be_l - mu_l * a_l
        return v * a_l + b_l                                          # single FMA pass

    # --- BN1 -> ReLU ---
    y = jnp.maximum(batchnorm(acc, g1_ref[...], be1_ref[...]), 0.0)

    # --- Conv2d(dim, dim, 1): one block-diagonal lane-dense matmul (bias cancels in BN2) ---
    z = jnp.dot(y, w2_ref[...], preferred_element_type=jnp.float32)

    # --- BN2 + residual add, lane-dense store (last dim = W*C) ---
    z = batchnorm(z, g2_ref[...], be2_ref[...])
    out = x.reshape(NH, WC) + z
    out_ref[...] = out.reshape(N, H, WC).astype(out_ref.dtype)


def res_block_pallas(x_nchw, params):
    """x_nchw: (N, C, H, W) float32. Returns (N, C, H, W)."""
    N, C, H, W = x_nchw.shape
    WC = W * C
    # NCHW -> (N, H, W*C): channels fastest within the lane axis.
    x = jnp.transpose(x_nchw, (0, 2, 3, 1)).reshape(N, H, WC).astype(jnp.float32)

    # 3x3 conv weights (Cout, Cin, kh, kw) -> per-kh banded (W*C, W*C) matrices:
    # fuse kw taps + channel contraction + W-direction zero padding into one K dim.
    w1 = params["w1"].astype(jnp.float32)
    eye_w = lambda k: jnp.eye(W, k=k, dtype=jnp.float32)
    w1_big = jnp.stack(
        [sum(jnp.kron(eye_w(1 - dx), w1[:, :, dy, dx].T) for dx in range(3))
         for dy in range(3)], axis=0)                                   # (3, W*C, W*C)
    # 1x1 conv -> block-diagonal (W*C, W*C)
    w2_big = jnp.kron(jnp.eye(W, dtype=jnp.float32),
                      params["w2"][:, :, 0, 0].astype(jnp.float32).T)   # (W*C, W*C)

    # per-channel mean matrix: (s @ p)[w*C + c] = (1/NHW) * sum over all rows,w of channel c
    p_mean = jnp.tile(jnp.eye(C, dtype=jnp.float32), (W, W)) / float(N * H * W)

    lane = lambda v: jnp.tile(v.astype(jnp.float32).reshape(1, C), (1, W))  # (1, W*C)
    args = (x, w1_big, w2_big, p_mean,
            lane(params["g1"]), lane(params["be1"]),
            lane(params["g2"]), lane(params["be2"]))

    full = lambda a: pl.BlockSpec(a.shape, lambda i, nd=a.ndim: (0,) * nd)

    # TODO(synk): for large N*H*W, tile the grid over rows with a two-pass BN
    # (cross-tile sum/sumsq accumulation) so batch statistics stay global.
    out = pl.pallas_call(
        resblock_kernel,
        out_shape=jax.ShapeDtypeStruct((N, H, WC), jnp.float32),
        grid=(1,),
        in_specs=[full(a) for a in args],
        out_specs=pl.BlockSpec((N, H, WC), lambda i: (0, 0, 0)),
        scratch_shapes=[pltpu.VMEM((N, H + 2, WC), jnp.float32)],
        compiler_params=pltpu.CompilerParams(
            dimension_semantics=("arbitrary",)),
    )(*args)
    return jnp.transpose(out.reshape(N, H, W, C), (0, 3, 1, 2))         # back to NCHW


def res_block_ref(x, p):
    """Pure-JAX reference (NCHW), mirrors the PyTorch forward in training mode."""
    h = jax.nn.relu(x)
    y = lax.conv_general_dilated(h, p["w1"], (1, 1), "SAME",
                                 dimension_numbers=("NCHW", "OIHW", "NCHW"))
    y = y + p["b1"][None, :, None, None]
    mu = y.mean((0, 2, 3), keepdims=True)
    var = ((y - mu) ** 2).mean((0, 2, 3), keepdims=True)
    y = (y - mu) / jnp.sqrt(var + EPS) * p["g1"][None, :, None, None] \
        + p["be1"][None, :, None, None]
    y = jax.nn.relu(y)
    z = lax.conv_general_dilated(y, p["w2"], (1, 1), "SAME",
                                 dimension_numbers=("NCHW", "OIHW", "NCHW"))
    z = z + p["b2"][None, :, None, None]
    mu2 = z.mean((0, 2, 3), keepdims=True)
    var2 = ((z - mu2) ** 2).mean((0, 2, 3), keepdims=True)
    z = (z - mu2) / jnp.sqrt(var2 + EPS) * p["g2"][None, :, None, None] \
        + p["be2"][None, :, None, None]
    return x + z


if __name__ == "__main__":
    N, C, H, W = 2, 8, 16, 16
    key = jax.random.PRNGKey(0)
    ks = jax.random.split(key, 8)

    params = {
        "w1": 0.1 * jax.random.normal(ks[0], (C, C, 3, 3), jnp.float32),
        "b1": 0.05 * jax.random.normal(ks[1], (C,), jnp.float32),
        "g1": 1.0 + 0.1 * jax.random.normal(ks[2], (C,), jnp.float32),
        "be1": 0.05 * jax.random.normal(ks[3], (C,), jnp.float32),
        "w2": 0.1 * jax.random.normal(ks[4], (C, C, 1, 1), jnp.float32),
        "b2": 0.05 * jax.random.normal(ks[5], (C,), jnp.float32),
        "g2": 1.0 + 0.1 * jax.random.normal(ks[6], (C,), jnp.float32),
        "be2": 0.05 * jax.random.normal(ks[7], (C,), jnp.float32),
    }
    x = jax.random.normal(jax.random.PRNGKey(42), (N, C, H, W), jnp.float32)

    out = jax.block_until_ready(res_block_pallas(x, params))
    ref = jax.block_until_ready(res_block_ref(x, params))

    assert out.shape == (N, C, H, W)
    assert jnp.allclose(out, ref, rtol=1e-4, atol=1e-4), \
        f"max abs diff {jnp.max(jnp.abs(out - ref))}"
    print("KERNEL_OK")
</pallas_src>

<mosaic_0001>
module attributes {stable_mosaic.version = 11 : i64} {
  func.func @resblock_kernel(%arg0: i32, %arg1: memref<2x16x128xf32, #tpu.memory_space<vmem>>, %arg2: memref<3x128x128xf32, #tpu.memory_space<vmem>>, %arg3: memref<128x128xf32, #tpu.memory_space<vmem>>, %arg4: memref<128x128xf32, #tpu.memory_space<vmem>>, %arg5: memref<1x128xf32, #tpu.memory_space<vmem>>, %arg6: memref<1x128xf32, #tpu.memory_space<vmem>>, %arg7: memref<1x128xf32, #tpu.memory_space<vmem>>, %arg8: memref<1x128xf32, #tpu.memory_space<vmem>>, %arg9: memref<2x16x128xf32, #tpu.memory_space<vmem>>, %arg10: memref<2x18x128xf32, #tpu.memory_space<vmem>>) attributes {dimension_semantics = [#tpu.dimension_semantics<arbitrary>], iteration_bounds = array<i64: 1>, scalar_prefetch = 0 : i64, scratch_operands = 1 : i64, tpu.core_type = #tpu.core_type<tc>, window_params = [{pipeline_mode = #tpu.pipeline_mode<synchronous>, transform_indices = @transform_0, window_bounds = array<i64: 2, 16, 128>}, {pipeline_mode = #tpu.pipeline_mode<synchronous>, transform_indices = @transform_1, window_bounds = array<i64: 3, 128, 128>}, {pipeline_mode = #tpu.pipeline_mode<synchronous>, transform_indices = @transform_2, window_bounds = array<i64: 128, 128>}, {pipeline_mode = #tpu.pipeline_mode<synchronous>, transform_indices = @transform_3, window_bounds = array<i64: 128, 128>}, {pipeline_mode = #tpu.pipeline_mode<synchronous>, transform_indices = @transform_4, window_bounds = array<i64: 1, 128>}, {pipeline_mode = #tpu.pipeline_mode<synchronous>, transform_indices = @transform_5, window_bounds = array<i64: 1, 128>}, {pipeline_mode = #tpu.pipeline_mode<synchronous>, transform_indices = @transform_6, window_bounds = array<i64: 1, 128>}, {pipeline_mode = #tpu.pipeline_mode<synchronous>, transform_indices = @transform_7, window_bounds = array<i64: 1, 128>}, {pipeline_mode = #tpu.pipeline_mode<synchronous>, transform_indices = @transform_8, window_bounds = array<i64: 2, 16, 128>}]} {
    %c0 = arith.constant 0 : index
    %c0_0 = arith.constant 0 : index
    %c0_1 = arith.constant 0 : index
    %0 = vector.load %arg1[%c0, %c0_0, %c0_1] : memref<2x16x128xf32, #tpu.memory_space<vmem>>, vector<2x16x128xf32>
    %cst = arith.constant 0.000000e+00 : f32
    %1 = vector.broadcast %cst : f32 to vector<2x1x128xf32>
    %c0_2 = arith.constant 0 : index
    %c0_3 = arith.constant 0 : index
    %c0_4 = arith.constant 0 : index
    %2 = vector.load %arg10[%c0_2, %c0_3, %c0_4] : memref<2x18x128xf32, #tpu.memory_space<vmem>>, vector<2x1x128xf32>
    tpu.vector_store %arg10[%c0_2, %c0_3, %c0_4], %1 {strides = array<i32>} : memref<2x18x128xf32, #tpu.memory_space<vmem>>, vector<2x1x128xf32>,
    %c0_5 = arith.constant 0 : index
    %c17 = arith.constant 17 : index
    %c0_6 = arith.constant 0 : index
    %3 = vector.load %arg10[%c0_5, %c17, %c0_6] : memref<2x18x128xf32, #tpu.memory_space<vmem>>, vector<2x1x128xf32>
    tpu.vector_store %arg10[%c0_5, %c17, %c0_6], %1 {strides = array<i32>} : memref<2x18x128xf32, #tpu.memory_space<vmem>>, vector<2x1x128xf32>,
    %cst_7 = arith.constant 0.000000e+00 : f32
    %4 = vector.broadcast %cst_7 : f32 to vector<2x16x128xf32>
    %5 = arith.maximumf %0, %4 : vector<2x16x128xf32>
    %c0_8 = arith.constant 0 : index
    %c1 = arith.constant 1 : index
    %c0_9 = arith.constant 0 : index
    %6 = vector.load %arg10[%c0_8, %c1, %c0_9] : memref<2x18x128xf32, #tpu.memory_space<vmem>>, vector<2x16x128xf32>
    tpu.vector_store %arg10[%c0_8, %c1, %c0_9], %5 {strides = array<i32>} : memref<2x18x128xf32, #tpu.memory_space<vmem>>, vector<2x16x128xf32>,
    %c0_10 = arith.constant 0 : index
    %c0_11 = arith.constant 0 : index
    %c0_12 = arith.constant 0 : index
    %7 = vector.load %arg10[%c0_10, %c0_11, %c0_12] : memref<2x18x128xf32, #tpu.memory_space<vmem>>, vector<2x16x128xf32>
    %8 = vector.shape_cast %7 : vector<2x16x128xf32> to vector<32x128xf32>
    %c0_13 = arith.constant 0 : index
    %c0_14 = arith.constant 0 : index
    %c0_15 = arith.constant 0 : index
    %9 = vector.load %arg2[%c0_13, %c0_14, %c0_15] : memref<3x128x128xf32, #tpu.memory_space<vmem>>, vector<1x128x128xf32>
    %10 = vector.shape_cast %9 : vector<1x128x128xf32> to vector<128x128xf32>
    %cst_16 = arith.constant dense<0.000000e+00> : vector<32x128xf32>
    %11 = tpu.matmul %8, %10, %cst_16 {dimension_numbers = #tpu.dot_dimension_numbers<[1], [0], [0], [1], [0, 0, 1, 1], [], []>} : vector<32x128xf32>, vector<128x128xf32>, vector<32x128xf32> -> vector<32x128xf32>
    %c0_17 = arith.constant 0 : index
    %c1_18 = arith.constant 1 : index
    %c0_19 = arith.constant 0 : index
    %12 = vector.load %arg10[%c0_17, %c1_18, %c0_19] : memref<2x18x128xf32, #tpu.memory_space<vmem>>, vector<2x16x128xf32>
    %13 = vector.shape_cast %12 : vector<2x16x128xf32> to vector<32x128xf32>
    %c1_20 = arith.constant 1 : index
    %c0_21 = arith.constant 0 : index
    %c0_22 = arith.constant 0 : index
    %14 = vector.load %arg2[%c1_20, %c0_21, %c0_22] : memref<3x128x128xf32, #tpu.memory_space<vmem>>, vector<1x128x128xf32>
    %15 = vector.shape_cast %14 : vector<1x128x128xf32> to vector<128x128xf32>
    %cst_23 = arith.constant dense<0.000000e+00> : vector<32x128xf32>
    %16 = tpu.matmul %13, %15, %cst_23 {dimension_numbers = #tpu.dot_dimension_numbers<[1], [0], [0], [1], [0, 0, 1, 1], [], []>} : vector<32x128xf32>, vector<128x128xf32>, vector<32x128xf32> -> vector<32x128xf32>
    %17 = arith.addf %11, %16 : vector<32x128xf32>
    %c0_24 = arith.constant 0 : index
    %c2 = arith.constant 2 : index
    %c0_25 = arith.constant 0 : index
    %18 = vector.load %arg10[%c0_24, %c2, %c0_25] : memref<2x18x128xf32, #tpu.memory_space<vmem>>, vector<2x16x128xf32>
    %19 = vector.shape_cast %18 : vector<2x16x128xf32> to vector<32x128xf32>
    %c2_26 = arith.constant 2 : index
    %c0_27 = arith.constant 0 : index
    %c0_28 = arith.constant 0 : index
    %20 = vector.load %arg2[%c2_26, %c0_27, %c0_28] : memref<3x128x128xf32, #tpu.memory_space<vmem>>, vector<1x128x128xf32>
    %21 = vector.shape_cast %20 : vector<1x128x128xf32> to vector<128x128xf32>
    %cst_29 = arith.constant dense<0.000000e+00> : vector<32x128xf32>
    %22 = tpu.matmul %19, %21, %cst_29 {dimension_numbers = #tpu.dot_dimension_numbers<[1], [0], [0], [1], [0, 0, 1, 1], [], []>} : vector<32x128xf32>, vector<128x128xf32>, vector<32x128xf32> -> vector<32x128xf32>
    %23 = arith.addf %17, %22 : vector<32x128xf32>
    %cst_30 = arith.constant 1.000000e+00 : f32
    %24 = vector.broadcast %cst_30 : f32 to vector<1x32xf32>
    %c0_31 = arith.constant 0 : index
    %c0_32 = arith.constant 0 : index
    %25 = vector.load %arg4[%c0_31, %c0_32] : memref<128x128xf32, #tpu.memory_space<vmem>>, vector<128x128xf32>
    %c0_33 = arith.constant 0 : index
    %c0_34 = arith.constant 0 : index
    %26 = vector.load %arg5[%c0_33, %c0_34] : memref<1x128xf32, #tpu.memory_space<vmem>>, vector<1x128xf32>
    %c0_35 = arith.constant 0 : index
    %c0_36 = arith.constant 0 : index
    %27 = vector.load %arg6[%c0_35, %c0_36] : memref<1x128xf32, #tpu.memory_space<vmem>>, vector<1x128xf32>
    %cst_37 = arith.constant dense<0.000000e+00> : vector<1x128xf32>
    %28 = tpu.matmul %24, %23, %cst_37 {dimension_numbers = #tpu.dot_dimension_numbers<[1], [0], [0], [1], [0, 0, 1, 1], [], []>} : vector<1x32xf32>, vector<32x128xf32>, vector<1x128xf32> -> vector<1x128xf32>
    %cst_38 = arith.constant dense<0.000000e+00> : vector<1x128xf32>
    %29 = tpu.matmul %28, %25, %cst_38 {dimension_numbers = #tpu.dot_dimension_numbers<[1], [0], [0], [1], [0, 0, 1, 1], [], []>} : vector<1x128xf32>, vector<128x128xf32>, vector<1x128xf32> -> vector<1x128xf32>
    %30 = arith.mulf %23, %23 : vector<32x128xf32>
    %cst_39 = arith.constant dense<0.000000e+00> : vector<1x128xf32>
    %31 = tpu.matmul %24, %30, %cst_39 {dimension_numbers = #tpu.dot_dimension_numbers<[1], [0], [0], [1], [0, 0, 1, 1], [], []>} : vector<1x32xf32>, vector<32x128xf32>, vector<1x128xf32> -> vector<1x128xf32>
    %cst_40 = arith.constant dense<0.000000e+00> : vector<1x128xf32>
    %32 = tpu.matmul %31, %25, %cst_40 {dimension_numbers = #tpu.dot_dimension_numbers<[1], [0], [0], [1], [0, 0, 1, 1], [], []>} : vector<1x128xf32>, vector<128x128xf32>, vector<1x128xf32> -> vector<1x128xf32>
    %33 = arith.mulf %29, %29 : vector<1x128xf32>
    %34 = arith.subf %32, %33 : vector<1x128xf32>
    %cst_41 = arith.constant 9.99999974E-6 : f32
    %35 = vector.broadcast %cst_41 : f32 to vector<1x128xf32>
    %36 = arith.addf %34, %35 : vector<1x128xf32>
    %37 = math.rsqrt %36 : vector<1x128xf32>
    %38 = arith.mulf %26, %37 : vector<1x128xf32>
    %39 = arith.mulf %29, %38 : vector<1x128xf32>
    %40 = arith.subf %27, %39 : vector<1x128xf32>
    %41 = vector.broadcast %38 : vector<1x128xf32> to vector<32x128xf32>
    %42 = arith.mulf %23, %41 : vector<32x128xf32>
    %43 = vector.broadcast %40 : vector<1x128xf32> to vector<32x128xf32>
    %44 = arith.addf %42, %43 : vector<32x128xf32>
    %cst_42 = arith.constant 0.000000e+00 : f32
    %45 = vector.broadcast %cst_42 : f32 to vector<32x128xf32>
    %46 = arith.maximumf %44, %45 : vector<32x128xf32>
    %c0_43 = arith.constant 0 : index
    %c0_44 = arith.constant 0 : index
    %47 = vector.load %arg3[%c0_43, %c0_44] : memref<128x128xf32, #tpu.memory_space<vmem>>, vector<128x128xf32>
    %cst_45 = arith.constant dense<0.000000e+00> : vector<32x128xf32>
    %48 = tpu.matmul %46, %47, %cst_45 {dimension_numbers = #tpu.dot_dimension_numbers<[1], [0], [0], [1], [0, 0, 1, 1], [], []>} : vector<32x128xf32>, vector<128x128xf32>, vector<32x128xf32> -> vector<32x128xf32>
    %c0_46 = arith.constant 0 : index
    %c0_47 = arith.constant 0 : index
    %49 = vector.load %arg7[%c0_46, %c0_47] : memref<1x128xf32, #tpu.memory_space<vmem>>, vector<1x128xf32>
    %c0_48 = arith.constant 0 : index
    %c0_49 = arith.constant 0 : index
    %50 = vector.load %arg8[%c0_48, %c0_49] : memref<1x128xf32, #tpu.memory_space<vmem>>, vector<1x128xf32>
    %cst_50 = arith.constant dense<0.000000e+00> : vector<1x128xf32>
    %51 = tpu.matmul %24, %48, %cst_50 {dimension_numbers = #tpu.dot_dimension_numbers<[1], [0], [0], [1], [0, 0, 1, 1], [], []>} : vector<1x32xf32>, vector<32x128xf32>, vector<1x128xf32> -> vector<1x128xf32>
    %cst_51 = arith.constant dense<0.000000e+00> : vector<1x128xf32>
    %52 = tpu.matmul %51, %25, %cst_51 {dimension_numbers = #tpu.dot_dimension_numbers<[1], [0], [0], [1], [0, 0, 1, 1], [], []>} : vector<1x128xf32>, vector<128x128xf32>, vector<1x128xf32> -> vector<1x128xf32>
    %53 = arith.mulf %48, %48 : vector<32x128xf32>
    %cst_52 = arith.constant dense<0.000000e+00> : vector<1x128xf32>
    %54 = tpu.matmul %24, %53, %cst_52 {dimension_numbers = #tpu.dot_dimension_numbers<[1], [0], [0], [1], [0, 0, 1, 1], [], []>} : vector<1x32xf32>, vector<32x128xf32>, vector<1x128xf32> -> vector<1x128xf32>
    %cst_53 = arith.constant dense<0.000000e+00> : vector<1x128xf32>
    %55 = tpu.matmul %54, %25, %cst_53 {dimension_numbers = #tpu.dot_dimension_numbers<[1], [0], [0], [1], [0, 0, 1, 1], [], []>} : vector<1x128xf32>, vector<128x128xf32>, vector<1x128xf32> -> vector<1x128xf32>
    %56 = arith.mulf %52, %52 : vector<1x128xf32>
    %57 = arith.subf %55, %56 : vector<1x128xf32>
    %cst_54 = arith.constant 9.99999974E-6 : f32
    %58 = vector.broadcast %cst_54 : f32 to vector<1x128xf32>
    %59 = arith.addf %57, %58 : vector<1x128xf32>
    %60 = math.rsqrt %59 : vector<1x128xf32>
    %61 = arith.mulf %49, %60 : vector<1x128xf32>
    %62 = arith.mulf %52, %61 : vector<1x128xf32>
    %63 = arith.subf %50, %62 : vector<1x128xf32>
    %64 = vector.broadcast %61 : vector<1x128xf32> to vector<32x128xf32>
    %65 = arith.mulf %48, %64 : vector<32x128xf32>
    %66 = vector.broadcast %63 : vector<1x128xf32> to vector<32x128xf32>
    %67 = arith.addf %65, %66 : vector<32x128xf32>
    %68 = vector.shape_cast %0 : vector<2x16x128xf32> to vector<32x128xf32>
    %69 = arith.addf %68, %67 : vector<32x128xf32>
    %70 = vector.shape_cast %69 : vector<32x128xf32> to vector<2x16x128xf32>
    %c0_55 = arith.constant 0 : index
    %c0_56 = arith.constant 0 : index
    %c0_57 = arith.constant 0 : index
    %71 = vector.load %arg9[%c0_55, %c0_56, %c0_57] : memref<2x16x128xf32, #tpu.memory_space<vmem>>, vector<2x16x128xf32>
    tpu.vector_store %arg9[%c0_55, %c0_56, %c0_57], %70 {strides = array<i32>} : memref<2x16x128xf32, #tpu.memory_space<vmem>>, vector<2x16x128xf32>,
    return
  }
  func.func @transform_0(%arg0: i32) -> (i32, i32, i32) {
    %c0_i32 = arith.constant 0 : i32
    %c0_i32_0 = arith.constant 0 : i32
    %c0_i32_1 = arith.constant 0 : i32
    %c0_i32_2 = arith.constant 0 : i32
    return %c0_i32, %c0_i32_0, %c0_i32_1 : i32, i32, i32
  }
  func.func @transform_1(%arg0: i32) -> (i32, i32, i32) {
    %c0_i32 = arith.constant 0 : i32
    %c0_i32_0 = arith.constant 0 : i32
    %c0_i32_1 = arith.constant 0 : i32
    %c0_i32_2 = arith.constant 0 : i32
    return %c0_i32, %c0_i32_0, %c0_i32_1 : i32, i32, i32
  }
  func.func @transform_2(%arg0: i32) -> (i32, i32) {
    %c0_i32 = arith.constant 0 : i32
    %c0_i32_0 = arith.constant 0 : i32
    %c0_i32_1 = arith.constant 0 : i32
    return %c0_i32, %c0_i32_0 : i32, i32
  }
  func.func @transform_3(%arg0: i32) -> (i32, i32) {
    %c0_i32 = arith.constant 0 : i32
    %c0_i32_0 = arith.constant 0 : i32
    %c0_i32_1 = arith.constant 0 : i32
    return %c0_i32, %c0_i32_0 : i32, i32
  }
  func.func @transform_4(%arg0: i32) -> (i32, i32) {
    %c0_i32 = arith.constant 0 : i32
    %c0_i32_0 = arith.constant 0 : i32
    %c0_i32_1 = arith.constant 0 : i32
    return %c0_i32, %c0_i32_0 : i32, i32
  }
  func.func @transform_5(%arg0: i32) -> (i32, i32) {
    %c0_i32 = arith.constant 0 : i32
    %c0_i32_0 = arith.constant 0 : i32
    %c0_i32_1 = arith.constant 0 : i32
    return %c0_i32, %c0_i32_0 : i32, i32
  }
  func.func @transform_6(%arg0: i32) -> (i32, i32) {
    %c0_i32 = arith.constant 0 : i32
    %c0_i32_0 = arith.constant 0 : i32
    %c0_i32_1 = arith.constant 0 : i32
    return %c0_i32, %c0_i32_0 : i32, i32
  }
  func.func @transform_7(%arg0: i32) -> (i32, i32) {
    %c0_i32 = arith.constant 0 : i32
    %c0_i32_0 = arith.constant 0 : i32
    %c0_i32_1 = arith.constant 0 : i32
    return %c0_i32, %c0_i32_0 : i32, i32
  }
  func.func @transform_8(%arg0: i32) -> (i32, i32, i32) {
    %c0_i32 = arith.constant 0 : i32
    %c0_i32_0 = arith.constant 0 : i32
    %c0_i32_1 = arith.constant 0 : i32
    %c0_i32_2 = arith.constant 0 : i32
    return %c0_i32, %c0_i32_0, %c0_i32_1 : i32, i32, i32
  }
}

</mosaic_0001>

<llo_original>
// kernel: tpu_custom_call.1
$region0: #{tpu_custom_call.1}
  #allocation0 [shape = 'u32[]', space=smem, size = 0x4, offset = 0x4, fixed_abs, tag = 'smem constant byte address 0x4 - core index']
  #allocation1 [shape = 'u32[144,128]{1,0:T(1,128)}', space=vmem, size = 0x12000, scoped, tag = 'internal scratch']
  #allocation2 [shape = 'f32[2,18,128]{2,1,0:T(8,128)}', space=vmem, size = 0x6000, scoped, tag = 'scratch operand']
  %s0 = inlined_call_operand.hbm [shape: f32[2,16,128], index: 0, kind: input, shape index: {}]
  %s1 = inlined_call_operand.hbm [shape: f32[3,128,128], index: 1, kind: input, shape index: {}]
  %s2 = inlined_call_operand.hbm [shape: f32[128,128], index: 2, kind: input, shape index: {}]
  %s3 = inlined_call_operand.hbm [shape: f32[128,128], index: 3, kind: input, shape index: {}]
  %s4 = inlined_call_operand.vmem [shape: f32[1,128], index: 4, kind: input, shape index: {}]
  %s5 = inlined_call_operand.vmem [shape: f32[1,128], index: 5, kind: input, shape index: {}]
  %s6 = inlined_call_operand.vmem [shape: f32[1,128], index: 6, kind: input, shape index: {}]
  %s7 = inlined_call_operand.vmem [shape: f32[1,128], index: 7, kind: input, shape index: {}]
  %s8 = inlined_call_operand.hbm [shape: f32[2,16,128], index: 8, kind: output, shape index: {}]
  %s9 = sld [smem:[#allocation0]]
  $region58: #{tpu_custom_call.1} parent=0
    _
  %s11 = ssub.s32 1, %s9
  %s12 = scalar_select 0, %s11, %s9
  $region1: #{tpu_custom_call.1} parent=0
    #allocation3 [shape = 'u8[16384]{0}', space=vmem, size = 0x4000, scoped, tag = 'input window, operand 0, single buffered']
    #allocation4 [shape = 's32[1]{0}', space=sflag, size = 0x4, scoped, tag = 'scoped memory for tpu_custom_call.1']
    #allocation5 [shape = 's32[1]{0}', space=sflag, size = 0x4, scoped, tag = 'scoped memory for tpu_custom_call.1']
    #allocation6 [shape = 'u8[196608]{0}', space=vmem, size = 0x30000, scoped, tag = 'input window, operand 1, single buffered']
    #allocation7 [shape = 's32[1]{0}', space=sflag, size = 0x4, scoped, tag = 'scoped memory for tpu_custom_call.1']
    #allocation8 [shape = 'u8[65536]{0}', space=vmem, size = 0x10000, scoped, tag = 'input window, operand 2, single buffered']
    #allocation9 [shape = 'u8[65536]{0}', space=vmem, size = 0x10000, scoped, tag = 'input window, operand 3, single buffered']
    #allocation10 [shape = 's32[1]{0}', space=sflag, size = 0x4, scoped, tag = 'scoped memory for tpu_custom_call.1']
    #allocation11 [shape = 'u8[16384]{0}', space=vmem, size = 0x4000, scoped, tag = 'output window, operand 0, single buffered']
    %13 = vsyncpa [#allocation4], 0
    %14 = vsyncpa [#allocation7], 0
    %15 = vsyncpa [#allocation10], 0
    %16 = vsyncpa [#allocation5], 0
    // Predicated region
    $region2: #{tpu_custom_call.1} parent=1 // pred_check
      _
    $region3: #{tpu_custom_call.1} parent=1 // pred_check_branch
      %18 = sbr.rel (0) target = $region5
    $region4: #{tpu_custom_call.1} parent=1 // pred_region
      %s20 = ssub.s32 512, 512
      %21 = vsyncadd [#allocation4], %s20
      %s22 = sshll.u32 [#allocation3], 4
      %s23 = int_to_ptr.vmem [resolvable:$true] %s22
      %28 = dma.hbm_to_vmem [thread:$0]  %s0, 512, %s23, [#allocation4], 128, 128, 8
    $region5: #{tpu_custom_call.1} parent=1 // pred_fallthru
      _
    // Predicated region
    $region6: #{tpu_custom_call.1} parent=1 // pred_check
      _
    $region7: #{tpu_custom_call.1} parent=1 // pred_check_branch
      %30 = sbr.rel (0) target = $region9
    $region8: #{tpu_custom_call.1} parent=1 // pred_region
      %s32 = ssub.s32 6144, 6144
      %33 = vsyncadd [#allocation7], %s32
      %s34 = sshll.u32 [#allocation6], 4
      %s35 = int_to_ptr.vmem [resolvable:$true] %s34
      %40 = dma.hbm_to_vmem [thread:$0]  %s1, 6144, %s35, [#allocation7], 128, 128, 8
    $region9: #{tpu_custom_call.1} parent=1 // pred_fallthru
      _
    // Predicated region
    $region10: #{tpu_custom_call.1} parent=1 // pred_check
      _
    $region11: #{tpu_custom_call.1} parent=1 // pred_check_branch
      %42 = sbr.rel (0) target = $region13
    $region12: #{tpu_custom_call.1} parent=1 // pred_region
      %s44 = ssub.s32 2048, 2048
      %45 = vsyncadd [#allocation7], %s44
      %s46 = sshll.u32 [#allocation8], 4
      %s47 = int_to_ptr.vmem [resolvable:$true] %s46
      %52 = dma.hbm_to_vmem [thread:$0]  %s2, 2048, %s47, [#allocation7], 128, 128, 8
    $region13: #{tpu_custom_call.1} parent=1 // pred_fallthru
      _
    // Predicated region
    $region14: #{tpu_custom_call.1} parent=1 // pred_check
      _
    $region15: #{tpu_custom_call.1} parent=1 // pred_check_branch
      %54 = sbr.rel (0) target = $region17
    $region16: #{tpu_custom_call.1} parent=1 // pred_region
      %s56 = ssub.s32 2048, 2048
      %57 = vsyncadd [#allocation10], %s56
      %s58 = sshll.u32 [#allocation9], 4
      %s59 = int_to_ptr.vmem [resolvable:$true] %s58
      %64 = dma.hbm_to_vmem [thread:$0]  %s3, 2048, %s59, [#allocation10], 128, 128, 8
    $region17: #{tpu_custom_call.1} parent=1 // pred_fallthru
      _
    // Predicated region
    $region18: #{tpu_custom_call.1} parent=1 // pred_check
      _
    $region19: #{tpu_custom_call.1} parent=1 // pred_check_branch
      %66 = sbr.rel (0) target = $region21
    $region20: #{tpu_custom_call.1} parent=1 // pred_region
      _
    $region21: #{tpu_custom_call.1} parent=1 // pred_fallthru
      _
    // Predicated region
    $region22: #{tpu_custom_call.1} parent=1 // pred_check
      _
    $region23: #{tpu_custom_call.1} parent=1 // pred_check_branch
      %68 = sbr.rel (0) target = $region25
    $region24: #{tpu_custom_call.1} parent=1 // pred_region
      _
    $region25: #{tpu_custom_call.1} parent=1 // pred_fallthru
      _
    // Predicated region
    $region26: #{tpu_custom_call.1} parent=1 // pred_check
      _
    $region27: #{tpu_custom_call.1} parent=1 // pred_check_branch
      %70 = sbr.rel (0) target = $region29
    $region28: #{tpu_custom_call.1} parent=1 // pred_region
      _
    $region29: #{tpu_custom_call.1} parent=1 // pred_fallthru
      _
    // Predicated region
    $region30: #{tpu_custom_call.1} parent=1 // pred_check
      _
    $region31: #{tpu_custom_call.1} parent=1 // pred_check_branch
      %72 = sbr.rel (0) target = $region33
    $region32: #{tpu_custom_call.1} parent=1 // pred_region
      _
    $region33: #{tpu_custom_call.1} parent=1 // pred_fallthru
      _
    // Predicated region
    $region34: #{tpu_custom_call.1} parent=1 // pred_check
      _
    $region35: #{tpu_custom_call.1} parent=1 // pred_check_branch
      %74 = sbr.rel (0) target = $region37
    $region36: #{tpu_custom_call.1} parent=1 // pred_region
      %75 = dma.done [#allocation4], 512
    $region37: #{tpu_custom_call.1} parent=1 // pred_fallthru
      _
    // Predicated region
    $region38: #{tpu_custom_call.1} parent=1 // pred_check
      _
    $region39: #{tpu_custom_call.1} parent=1 // pred_check_branch
      %77 = sbr.rel (0) target = $region41
    $region40: #{tpu_custom_call.1} parent=1 // pred_region
      %78 = dma.done [#allocation7], 6144
    $region41: #{tpu_custom_call.1} parent=1 // pred_fallthru
      _
    // Predicated region
    $region42: #{tpu_custom_call.1} parent=1 // pred_check
      _
    $region43: #{tpu_custom_call.1} parent=1 // pred_check_branch
      %80 = sbr.rel (0) target = $region45
    $region44: #{tpu_custom_call.1} parent=1 // pred_region
      %81 = dma.done [#allocation7], 2048
    $region45: #{tpu_custom_call.1} parent=1 // pred_fallthru
      _
    // Predicated region
    $region46: #{tpu_custom_call.1} parent=1 // pred_check
      _
    $region47: #{tpu_custom_call.1} parent=1 // pred_check_branch
      %83 = sbr.rel (0) target = $region49
    $region48: #{tpu_custom_call.1} parent=1 // pred_region
      %84 = dma.done [#allocation10], 2048
    $region49: #{tpu_custom_call.1} parent=1 // pred_fallthru
      _
    %v85 = vld [vmem:[#allocation3] sm:$0xff]
    %v86 = vld [vmem:[#allocation3 + $0x8] sm:$0xff]
    %v87 = vld [vmem:[#allocation3 + $0x10] sm:$0xff]
    %v88 = vld [vmem:[#allocation3 + $0x18] sm:$0xff]
    %89 = vst [vmem:[#allocation2] sm:$0x1] 0.0
    %90 = vst [vmem:[#allocation2 + $0x18] sm:$0x1] 0.0
    %91 = vst [vmem:[#allocation2 + $0x11] sm:$0x1] 0.0
    %92 = vst [vmem:[#allocation2 + $0x29] sm:$0x1] 0.0
    %v93 = vmax.f32 %v85, 0.0
    %v94 = vmax.f32 %v86, 0.0
    %v95 = vmax.f32 %v87, 0.0
    %v96 = vmax.f32 %v88, 0.0
    %97 = vst [vmem:[#allocation2 + $0x1] sm:$0xff] %v93
    %98 = vst [vmem:[#allocation2 + $0x9] sm:$0xff] %v94
    %99 = vst [vmem:[#allocation2 + $0x19] sm:$0xff] %v95
    %100 = vst [vmem:[#allocation2 + $0x21] sm:$0xff] %v96
    %v101 = vld [vmem:[#allocation2] sm:$0xff]
    %v102 = vld [vmem:[#allocation2 + $0x8] sm:$0xff]
    %v103 = vld [vmem:[#allocation2 + $0x18] sm:$0xff]
    %v104 = vld [vmem:[#allocation2 + $0x20] sm:$0xff]
    %v105 = vld [vmem:[#allocation6] sm:$0xff]
    %v106 = vld [vmem:[#allocation6 + $0x8] sm:$0xff]
    %v107 = vld [vmem:[#allocation6 + $0x10] sm:$0xff]
    %v108 = vld [vmem:[#allocation6 + $0x18] sm:$0xff]
    %v109 = vld [vmem:[#allocation6 + $0x20] sm:$0xff]
    %v110 = vld [vmem:[#allocation6 + $0x28] sm:$0xff]
    %v111 = vld [vmem:[#allocation6 + $0x30] sm:$0xff]
    %v112 = vld [vmem:[#allocation6 + $0x38] sm:$0xff]
    %v113 = vld [vmem:[#allocation6 + $0x40] sm:$0xff]
    %v114 = vld [vmem:[#allocation6 + $0x48] sm:$0xff]
    %v115 = vld [vmem:[#allocation6 + $0x50] sm:$0xff]
    %v116 = vld [vmem:[#allocation6 + $0x58] sm:$0xff]
    %v117 = vld [vmem:[#allocation6 + $0x60] sm:$0xff]
    %v118 = vld [vmem:[#allocation6 + $0x68] sm:$0xff]
    %v119 = vld [vmem:[#allocation6 + $0x70] sm:$0xff]
    %v120 = vld [vmem:[#allocation6 + $0x78] sm:$0xff]
    %v121 = vld [vmem:[#allocation2 + $0x1] sm:$0xff]
    %v122 = vld [vmem:[#allocation2 + $0x9] sm:$0xff]
    %v123 = vld [vmem:[#allocation2 + $0x19] sm:$0xff]
    %v124 = vld [vmem:[#allocation2 + $0x21] sm:$0xff]
    %s125 = scalar_lea.vmem [#allocation6], 128
    %v126 = vld [vmem:[%s125] sm:$0xff]
    %v127 = vld [vmem:[%s125 + $0x8] sm:$0xff]
    %v128 = vld [vmem:[%s125 + $0x10] sm:$0xff]
    %v129 = vld [vmem:[%s125 + $0x18] sm:$0xff]
    %v130 = vld [vmem:[%s125 + $0x20] sm:$0xff]
    %v131 = vld [vmem:[%s125 + $0x28] sm:$0xff]
    %v132 = vld [vmem:[%s125 + $0x30] sm:$0xff]
    %v133 = vld [vmem:[%s125 + $0x38] sm:$0xff]
    %v134 = vld [vmem:[%s125 + $0x40] sm:$0xff]
    %v135 = vld [vmem:[%s125 + $0x48] sm:$0xff]
    %v136 = vld [vmem:[%s125 + $0x50] sm:$0xff]
    %v137 = vld [vmem:[%s125 + $0x58] sm:$0xff]
    %v138 = vld [vmem:[%s125 + $0x60] sm:$0xff]
    %v139 = vld [vmem:[%s125 + $0x68] sm:$0xff]
    %v140 = vld [vmem:[%s125 + $0x70] sm:$0xff]
    %v141 = vld [vmem:[%s125 + $0x78] sm:$0xff]
    %142 = vmatprep.subr.mxu0 0.0
    %143 = vmatpush1.msra.mxu0 %v141
    %144 = vmatprep.subr.mxu0 0.0
    %145 = vmatpush1.msra.mxu0 %v140
    %146 = vmatprep.subr.mxu0 0.0
    %147 = vmatpush1.msra.mxu0 %v139
    %148 = vmatprep.subr.mxu0 0.0
    %149 = vmatpush1.msra.mxu0 %v138
    %150 = vmatprep.subr.mxu0 0.0
    %151 = vmatpush1.msra.mxu0 %v137
    %152 = vmatprep.subr.mxu0 0.0
    %153 = vmatpush1.msra.mxu0 %v136
    %154 = vmatprep.subr.mxu0 0.0
    %155 = vmatpush1.msra.mxu0 %v135
    %156 = vmatprep.subr.mxu0 0.0
    %157 = vmatpush1.msra.mxu0 %v134
    %158 = vmatprep.subr.mxu0 0.0
    %159 = vmatpush1.msra.mxu0 %v133
    %160 = vmatprep.subr.mxu0 0.0
    %161 = vmatpush1.msra.mxu0 %v132
    %162 = vmatprep.subr.mxu0 0.0
    %163 = vmatpush1.msra.mxu0 %v131
    %164 = vmatprep.subr.mxu0 0.0
    %165 = vmatpush1.msra.mxu0 %v130
    %166 = vmatprep.subr.mxu0 0.0
    %167 = vmatpush1.msra.mxu0 %v129
    %168 = vmatprep.subr.mxu0 0.0
    %169 = vmatpush1.msra.mxu0 %v128
    %170 = vmatprep.subr.mxu0 0.0
    %171 = vmatpush1.msra.mxu0 %v127
    %172 = vmatprep.subr.mxu0 0.0
    %173 = vmatpush1.msra.mxu0 %v126
    %174 = vmatprep.subr.mxu0 0.0
    %175 = vmatpush2.msra.mxu0 0.0
    %176 = vmatprep.subr.mxu0 0.0
    %177 = vmatpush2.msra.mxu0 0.0
    %178 = vmatprep.subr.mxu0 0.0
    %179 = vmatpush2.msra.mxu0 0.0
    %180 = vmatprep.subr.mxu0 0.0
    %181 = vmatpush2.msra.mxu0 0.0
    %182 = vmatprep.subr.mxu0 0.0
    %183 = vmatpush2.msra.mxu0 0.0
    %184 = vmatprep.subr.mxu0 0.0
    %185 = vmatpush2.msra.mxu0 0.0
    %186 = vmatprep.subr.mxu0 0.0
    %187 = vmatpush2.msra.mxu0 0.0
    %188 = vmatprep.subr.mxu0 0.0
    %189 = vmatpush2.msra.mxu0 0.0
    %190 = vmatprep.subr.mxu0 0.0
    %191 = vmatpush2.msra.mxu0 0.0
    %192 = vmatprep.subr.mxu0 0.0
    %193 = vmatpush2.msra.mxu0 0.0
    %194 = vmatprep.subr.mxu0 0.0
    %195 = vmatpush2.msra.mxu0 0.0
    %196 = vmatprep.subr.mxu0 0.0
    %197 = vmatpush2.msra.mxu0 0.0
    %198 = vmatprep.subr.mxu0 0.0
    %199 = vmatpush2.msra.mxu0 0.0
    %200 = vmatprep.subr.mxu0 0.0
    %201 = vmatpush2.msra.mxu0 0.0
    %202 = vmatprep.subr.mxu0 0.0
    %203 = vmatpush2.msra.mxu0 0.0
    %204 = vmatprep.subr.mxu0 0.0
    %205 = vmatpush2.msra.mxu0 0.0
    %206 = vmatprep.mubr.f32.mxu0 0.0
    %207 = vmatmul.mubr.f32.gmra.mxu0 %v121
    %v208 = vpop.f32.mrf.mxu0
    %v209 = vadd.f32 0.0, %v208
    %v210 = vpop.f32.mrf.mxu0
    %211 = vmatprep.mubr.f32.mxu0 0.0
    %212 = vmatmul.mubr.f32.gmra.mxu0 %v122
    %v213 = vpop.f32.mrf.mxu0
    %v214 = vadd.f32 0.0, %v213
    %v215 = vpop.f32.mrf.mxu0
    %216 = vmatprep.mubr.f32.mxu0 0.0
    %217 = vmatmul.mubr.f32.gmra.mxu0 %v123
    %v218 = vpop.f32.mrf.mxu0
    %v219 = vadd.f32 0.0, %v218
    %v220 = vpop.f32.mrf.mxu0
    %221 = vmatprep.mubr.f32.mxu0 0.0
    %222 = vmatmul.mubr.f32.gmra.mxu0 %v124
    %v223 = vpop.f32.mrf.mxu0
    %v224 = vadd.f32 0.0, %v223
    %v225 = vpop.f32.mrf.mxu0
    %226 = vdwg.mxu0
    %227 = vmatprep.subr.mxu0 0.0
    %228 = vmatpush1.msra.mxu0 %v120
    %229 = vmatprep.subr.mxu0 0.0
    %230 = vmatpush1.msra.mxu0 %v119
    %231 = vmatprep.subr.mxu0 0.0
    %232 = vmatpush1.msra.mxu0 %v118
    %233 = vmatprep.subr.mxu0 0.0
    %234 = vmatpush1.msra.mxu0 %v117
    %235 = vmatprep.subr.mxu0 0.0
    %236 = vmatpush1.msra.mxu0 %v116
    %237 = vmatprep.subr.mxu0 0.0
    %238 = vmatpush1.msra.mxu0 %v115
    %239 = vmatprep.subr.mxu0 0.0
    %240 = vmatpush1.msra.mxu0 %v114
    %241 = vmatprep.subr.mxu0 0.0
    %242 = vmatpush1.msra.mxu0 %v113
    %243 = vmatprep.subr.mxu0 0.0
    %244 = vmatpush1.msra.mxu0 %v112
    %245 = vmatprep.subr.mxu0 0.0
    %246 = vmatpush1.msra.mxu0 %v111
    %247 = vmatprep.subr.mxu0 0.0
    %248 = vmatpush1.msra.mxu0 %v110
    %249 = vmatprep.subr.mxu0 0.0
    %250 = vmatpush1.msra.mxu0 %v109
    %251 = vmatprep.subr.mxu0 0.0
    %252 = vmatpush1.msra.mxu0 %v108
    %253 = vmatprep.subr.mxu0 0.0
    %254 = vmatpush1.msra.mxu0 %v107
    %255 = vmatprep.subr.mxu0 0.0
    %256 = vmatpush1.msra.mxu0 %v106
    %257 = vmatprep.subr.mxu0 0.0
    %258 = vmatpush1.msra.mxu0 %v105
    %259 = vmatprep.subr.mxu0 0.0
    %260 = vmatpush2.msra.mxu0 0.0
    %261 = vmatprep.subr.mxu0 0.0
    %262 = vmatpush2.msra.mxu0 0.0
    %263 = vmatprep.subr.mxu0 0.0
    %264 = vmatpush2.msra.mxu0 0.0
    %265 = vmatprep.subr.mxu0 0.0
    %266 = vmatpush2.msra.mxu0 0.0
    %267 = vmatprep.subr.mxu0 0.0
    %268 = vmatpush2.msra.mxu0 0.0
    %269 = vmatprep.subr.mxu0 0.0
    %270 = vmatpush2.msra.mxu0 0.0
    %271 = vmatprep.subr.mxu0 0.0
    %272 = vmatpush2.msra.mxu0 0.0
    %273 = vmatprep.subr.mxu0 0.0
    %274 = vmatpush2.msra.mxu0 0.0
    %275 = vmatprep.subr.mxu0 0.0
    %276 = vmatpush2.msra.mxu0 0.0
    %277 = vmatprep.subr.mxu0 0.0
    %278 = vmatpush2.msra.mxu0 0.0
    %279 = vmatprep.subr.mxu0 0.0
    %280 = vmatpush2.msra.mxu0 0.0
    %281 = vmatprep.subr.mxu0 0.0
    %282 = vmatpush2.msra.mxu0 0.0
    %283 = vmatprep.subr.mxu0 0.0
    %284 = vmatpush2.msra.mxu0 0.0
    %285 = vmatprep.subr.mxu0 0.0
    %286 = vmatpush2.msra.mxu0 0.0
    %287 = vmatprep.subr.mxu0 0.0
    %288 = vmatpush2.msra.mxu0 0.0
    %289 = vmatprep.subr.mxu0 0.0
    %290 = vmatpush2.msra.mxu0 0.0
    %291 = vmatprep.mubr.f32.mxu0 0.0
    %292 = vmatmul.mubr.f32.gmra.mxu0 %v101
    %v293 = vpop.f32.mrf.mxu0
    %v294 = vadd.f32 %v209, %v293
    %v295 = vpop.f32.mrf.mxu0
    %296 = vmatprep.mubr.f32.mxu0 0.0
    %297 = vmatmul.mubr.f32.gmra.mxu0 %v102
    %v298 = vpop.f32.mrf.mxu0
    %v299 = vadd.f32 %v214, %v298
    %v300 = vpop.f32.mrf.mxu0
    %301 = vmatprep.mubr.f32.mxu0 0.0
    %302 = vmatmul.mubr.f32.gmra.mxu0 %v103
    %v303 = vpop.f32.mrf.mxu0
    %v304 = vadd.f32 %v219, %v303
    %v305 = vpop.f32.mrf.mxu0
    %306 = vmatprep.mubr.f32.mxu0 0.0
    %307 = vmatmul.mubr.f32.gmra.mxu0 %v104
    %v308 = vpop.f32.mrf.mxu0
    %v309 = vadd.f32 %v224, %v308
    %v310 = vpop.f32.mrf.mxu0
    %311 = vdwg.mxu0
    %v312 = vld [vmem:[#allocation2 + $0x2] sm:$0xff]
    %v313 = vld [vmem:[#allocation2 + $0xa] sm:$0xff]
    %v314 = vld [vmem:[#allocation2 + $0x1a] sm:$0xff]
    %v315 = vld [vmem:[#allocation2 + $0x22] sm:$0xff]
    %s316 = scalar_lea.vmem [#allocation6], 256
    %v317 = vld [vmem:[%s316] sm:$0xff]
    %v318 = vld [vmem:[%s316 + $0x8] sm:$0xff]
    %v319 = vld [vmem:[%s316 + $0x10] sm:$0xff]
    %v320 = vld [vmem:[%s316 + $0x18] sm:$0xff]
    %v321 = vld [vmem:[%s316 + $0x20] sm:$0xff]
    %v322 = vld [vmem:[%s316 + $0x28] sm:$0xff]
    %v323 = vld [vmem:[%s316 + $0x30] sm:$0xff]
    %v324 = vld [vmem:[%s316 + $0x38] sm:$0xff]
    %v325 = vld [vmem:[%s316 + $0x40] sm:$0xff]
    %v326 = vld [vmem:[%s316 + $0x48] sm:$0xff]
    %v327 = vld [vmem:[%s316 + $0x50] sm:$0xff]
    %v328 = vld [vmem:[%s316 + $0x58] sm:$0xff]
    %v329 = vld [vmem:[%s316 + $0x60] sm:$0xff]
    %v330 = vld [vmem:[%s316 + $0x68] sm:$0xff]
    %v331 = vld [vmem:[%s316 + $0x70] sm:$0xff]
    %v332 = vld [vmem:[%s316 + $0x78] sm:$0xff]
    %333 = vmatprep.subr.mxu0 0.0
    %334 = vmatpush1.msra.mxu0 %v332
    %335 = vmatprep.subr.mxu0 0.0
    %336 = vmatpush1.msra.mxu0 %v331
    %337 = vmatprep.subr.mxu0 0.0
    %338 = vmatpush1.msra.mxu0 %v330
    %339 = vmatprep.subr.mxu0 0.0
    %340 = vmatpush1.msra.mxu0 %v329
    %341 = vmatprep.subr.mxu0 0.0
    %342 = vmatpush1.msra.mxu0 %v328
    %343 = vmatprep.subr.mxu0 0.0
    %344 = vmatpush1.msra.mxu0 %v327
    %345 = vmatprep.subr.mxu0 0.0
    %346 = vmatpush1.msra.mxu0 %v326
    %347 = vmatprep.subr.mxu0 0.0
    %348 = vmatpush1.msra.mxu0 %v325
    %349 = vmatprep.subr.mxu0 0.0
    %350 = vmatpush1.msra.mxu0 %v324
    %351 = vmatprep.subr.mxu0 0.0
    %352 = vmatpush1.msra.mxu0 %v323
    %353 = vmatprep.subr.mxu0 0.0
    %354 = vmatpush1.msra.mxu0 %v322
    %355 = vmatprep.subr.mxu0 0.0
    %356 = vmatpush1.msra.mxu0 %v321
    %357 = vmatprep.subr.mxu0 0.0
    %358 = vmatpush1.msra.mxu0 %v320
    %359 = vmatprep.subr.mxu0 0.0
    %360 = vmatpush1.msra.mxu0 %v319
    %361 = vmatprep.subr.mxu0 0.0
    %362 = vmatpush1.msra.mxu0 %v318
    %363 = vmatprep.subr.mxu0 0.0
    %364 = vmatpush1.msra.mxu0 %v317
    %365 = vmatprep.subr.mxu0 0.0
    %366 = vmatpush2.msra.mxu0 0.0
    %367 = vmatprep.subr.mxu0 0.0
    %368 = vmatpush2.msra.mxu0 0.0
    %369 = vmatprep.subr.mxu0 0.0
    %370 = vmatpush2.msra.mxu0 0.0
    %371 = vmatprep.subr.mxu0 0.0
    %372 = vmatpush2.msra.mxu0 0.0
    %373 = vmatprep.subr.mxu0 0.0
    %374 = vmatpush2.msra.mxu0 0.0
    %375 = vmatprep.subr.mxu0 0.0
    %376 = vmatpush2.msra.mxu0 0.0
    %377 = vmatprep.subr.mxu0 0.0
    %378 = vmatpush2.msra.mxu0 0.0
    %379 = vmatprep.subr.mxu0 0.0
    %380 = vmatpush2.msra.mxu0 0.0
    %381 = vmatprep.subr.mxu0 0.0
    %382 = vmatpush2.msra.mxu0 0.0
    %383 = vmatprep.subr.mxu0 0.0
    %384 = vmatpush2.msra.mxu0 0.0
    %385 = vmatprep.subr.mxu0 0.0
    %386 = vmatpush2.msra.mxu0 0.0
    %387 = vmatprep.subr.mxu0 0.0
    %388 = vmatpush2.msra.mxu0 0.0
    %389 = vmatprep.subr.mxu0 0.0
    %390 = vmatpush2.msra.mxu0 0.0
    %391 = vmatprep.subr.mxu0 0.0
    %392 = vmatpush2.msra.mxu0 0.0
    %393 = vmatprep.subr.mxu0 0.0
    %394 = vmatpush2.msra.mxu0 0.0
    %395 = vmatprep.subr.mxu0 0.0
    %396 = vmatpush2.msra.mxu0 0.0
    %397 = vmatprep.mubr.f32.mxu0 0.0
    %398 = vmatmul.mubr.f32.gmra.mxu0 %v312
    %v399 = vpop.f32.mrf.mxu0
    %v400 = vadd.f32 0.0, %v399
    %v401 = vpop.f32.mrf.mxu0
    %402 = vmatprep.mubr.f32.mxu0 0.0
    %403 = vmatmul.mubr.f32.gmra.mxu0 %v313
    %v404 = vpop.f32.mrf.mxu0
    %v405 = vadd.f32 0.0, %v404
    %v406 = vpop.f32.mrf.mxu0
    %407 = vmatprep.mubr.f32.mxu0 0.0
    %408 = vmatmul.mubr.f32.gmra.mxu0 %v314
    %v409 = vpop.f32.mrf.mxu0
    %v410 = vadd.f32 0.0, %v409
    %v411 = vpop.f32.mrf.mxu0
    %412 = vmatprep.mubr.f32.mxu0 0.0
    %413 = vmatmul.mubr.f32.gmra.mxu0 %v315
    %v414 = vpop.f32.mrf.mxu0
    %v415 = vadd.f32 0.0, %v414
    %v416 = vpop.f32.mrf.mxu0
    %417 = vdwg.mxu0
    %v418 = vadd.f32 %v294, %v400
    %v419 = vadd.f32 %v299, %v405
    %v420 = vadd.f32 %v304, %v410
    %v421 = vadd.f32 %v309, %v415
    %v422 = vld [vmem:[#allocation9] sm:$0xff]
    %v423 = vld [vmem:[#allocation9 + $0x8] sm:$0xff]
    %v424 = vld [vmem:[#allocation9 + $0x10] sm:$0xff]
    %v425 = vld [vmem:[#allocation9 + $0x18] sm:$0xff]
    %v426 = vld [vmem:[#allocation9 + $0x20] sm:$0xff]
    %v427 = vld [vmem:[#allocation9 + $0x28] sm:$0xff]
    %v428 = vld [vmem:[#allocation9 + $0x30] sm:$0xff]
    %v429 = vld [vmem:[#allocation9 + $0x38] sm:$0xff]
    %v430 = vld [vmem:[#allocation9 + $0x40] sm:$0xff]
    %v431 = vld [vmem:[#allocation9 + $0x48] sm:$0xff]
    %v432 = vld [vmem:[#allocation9 + $0x50] sm:$0xff]
    %v433 = vld [vmem:[#allocation9 + $0x58] sm:$0xff]
    %v434 = vld [vmem:[#allocation9 + $0x60] sm:$0xff]
    %v435 = vld [vmem:[#allocation9 + $0x68] sm:$0xff]
    %v436 = vld [vmem:[#allocation9 + $0x70] sm:$0xff]
    %v437 = vld [vmem:[#allocation9 + $0x78] sm:$0xff]
    %v438 = vld [vmem:[%s4] sm:$0x1]
    %v439 = vld [vmem:[%s5] sm:$0x1]
    %vm440 = vcmask 261120
    %v442 = vsel %vm440, 1.0, 0
    %444 = vmatprep.subr.mxu0 0.0
    %445 = vmatpush1.msra.mxu0 0.0
    %446 = vmatprep.subr.mxu0 0.0
    %447 = vmatpush1.msra.mxu0 0.0
    %448 = vmatprep.subr.mxu0 0.0
    %449 = vmatpush1.msra.mxu0 0.0
    %450 = vmatprep.subr.mxu0 0.0
    %451 = vmatpush1.msra.mxu0 0.0
    %452 = vmatprep.subr.mxu0 0.0
    %453 = vmatpush1.msra.mxu0 0.0
    %454 = vmatprep.subr.mxu0 0.0
    %455 = vmatpush1.msra.mxu0 0.0
    %456 = vmatprep.subr.mxu0 0.0
    %457 = vmatpush1.msra.mxu0 0.0
    %458 = vmatprep.subr.mxu0 0.0
    %459 = vmatpush1.msra.mxu0 0.0
    %460 = vmatprep.subr.mxu0 0.0
    %461 = vmatpush1.msra.mxu0 0.0
    %462 = vmatprep.subr.mxu0 0.0
    %463 = vmatpush1.msra.mxu0 0.0
    %464 = vmatprep.subr.mxu0 0.0
    %465 = vmatpush1.msra.mxu0 0.0
    %466 = vmatprep.subr.mxu0 0.0
    %467 = vmatpush1.msra.mxu0 0.0
    %468 = vmatprep.subr.mxu0 0.0
    %469 = vmatpush1.msra.mxu0 %v421
    %470 = vmatprep.subr.mxu0 0.0
    %471 = vmatpush1.msra.mxu0 %v420
    %472 = vmatprep.subr.mxu0 0.0
    %473 = vmatpush1.msra.mxu0 %v419
    %474 = vmatprep.subr.mxu0 0.0
    %475 = vmatpush1.msra.mxu0 %v418
    %476 = vmatprep.subr.mxu0 0.0
    %477 = vmatpush2.msra.mxu0 0.0
    %478 = vmatprep.subr.mxu0 0.0
    %479 = vmatpush2.msra.mxu0 0.0
    %480 = vmatprep.subr.mxu0 0.0
    %481 = vmatpush2.msra.mxu0 0.0
    %482 = vmatprep.subr.mxu0 0.0
    %483 = vmatpush2.msra.mxu0 0.0
    %484 = vmatprep.subr.mxu0 0.0
    %485 = vmatpush2.msra.mxu0 0.0
    %486 = vmatprep.subr.mxu0 0.0
    %487 = vmatpush2.msra.mxu0 0.0
    %488 = vmatprep.subr.mxu0 0.0
    %489 = vmatpush2.msra.mxu0 0.0
    %490 = vmatprep.subr.mxu0 0.0
    %491 = vmatpush2.msra.mxu0 0.0
    %492 = vmatprep.subr.mxu0 0.0
    %493 = vmatpush2.msra.mxu0 0.0
    %494 = vmatprep.subr.mxu0 0.0
    %495 = vmatpush2.msra.mxu0 0.0
    %496 = vmatprep.subr.mxu0 0.0
    %497 = vmatpush2.msra.mxu0 0.0
    %498 = vmatprep.subr.mxu0 0.0
    %499 = vmatpush2.msra.mxu0 0.0
    %500 = vmatprep.subr.mxu0 0.0
    %501 = vmatpush2.msra.mxu0 0.0
    %502 = vmatprep.subr.mxu0 0.0
    %503 = vmatpush2.msra.mxu0 0.0
    %504 = vmatprep.subr.mxu0 0.0
    %505 = vmatpush2.msra.mxu0 0.0
    %506 = vmatprep.subr.mxu0 0.0
    %507 = vmatpush2.msra.mxu0 0.0
    %508 = vmatprep.mubr.f32.mxu0 0.0
    %509 = vmatmul.mubr.f32.gmra.mxu0 %v442
    %v510 = vpop.f32.mrf.mxu0
    %v511 = vadd.f32 0.0, %v510
    %v512 = vpop.f32.mrf.mxu0
    %513 = vdwg.mxu0
    %514 = vmatprep.subr.mxu0 0.0
    %515 = vmatpush1.msra.mxu0 %v437
    %516 = vmatprep.subr.mxu0 0.0
    %517 = vmatpush1.msra.mxu0 %v436
    %518 = vmatprep.subr.mxu0 0.0
    %519 = vmatpush1.msra.mxu0 %v435
    %520 = vmatprep.subr.mxu0 0.0
    %521 = vmatpush1.msra.mxu0 %v434
    %522 = vmatprep.subr.mxu0 0.0
    %523 = vmatpush1.msra.mxu0 %v433
    %524 = vmatprep.subr.mxu0 0.0
    %525 = vmatpush1.msra.mxu0 %v432
    %526 = vmatprep.subr.mxu0 0.0
    %527 = vmatpush1.msra.mxu0 %v431
    %528 = vmatprep.subr.mxu0 0.0
    %529 = vmatpush1.msra.mxu0 %v430
    %530 = vmatprep.subr.mxu0 0.0
    %531 = vmatpush1.msra.mxu0 %v429
    %532 = vmatprep.subr.mxu0 0.0
    %533 = vmatpush1.msra.mxu0 %v428
    %534 = vmatprep.subr.mxu0 0.0
    %535 = vmatpush1.msra.mxu0 %v427
    %536 = vmatprep.subr.mxu0 0.0
    %537 = vmatpush1.msra.mxu0 %v426
    %538 = vmatprep.subr.mxu0 0.0
    %539 = vmatpush1.msra.mxu0 %v425
    %540 = vmatprep.subr.mxu0 0.0
    %541 = vmatpush1.msra.mxu0 %v424
    %542 = vmatprep.subr.mxu0 0.0
    %543 = vmatpush1.msra.mxu0 %v423
    %544 = vmatprep.subr.mxu0 0.0
    %545 = vmatpush1.msra.mxu0 %v422
    %546 = vmatprep.subr.mxu0 0.0
    %547 = vmatpush2.msra.mxu0 0.0
    %548 = vmatprep.subr.mxu0 0.0
    %549 = vmatpush2.msra.mxu0 0.0
    %550 = vmatprep.subr.mxu0 0.0
    %551 = vmatpush2.msra.mxu0 0.0
    %552 = vmatprep.subr.mxu0 0.0
    %553 = vmatpush2.msra.mxu0 0.0
    %554 = vmatprep.subr.mxu0 0.0
    %555 = vmatpush2.msra.mxu0 0.0
    %556 = vmatprep.subr.mxu0 0.0
    %557 = vmatpush2.msra.mxu0 0.0
    %558 = vmatprep.subr.mxu0 0.0
    %559 = vmatpush2.msra.mxu0 0.0
    %560 = vmatprep.subr.mxu0 0.0
    %561 = vmatpush2.msra.mxu0 0.0
    %562 = vmatprep.subr.mxu0 0.0
    %563 = vmatpush2.msra.mxu0 0.0
    %564 = vmatprep.subr.mxu0 0.0
    %565 = vmatpush2.msra.mxu0 0.0
    %566 = vmatprep.subr.mxu0 0.0
    %567 = vmatpush2.msra.mxu0 0.0
    %568 = vmatprep.subr.mxu0 0.0
    %569 = vmatpush2.msra.mxu0 0.0
    %570 = vmatprep.subr.mxu0 0.0
    %571 = vmatpush2.msra.mxu0 0.0
    %572 = vmatprep.subr.mxu0 0.0
    %573 = vmatpush2.msra.mxu0 0.0
    %574 = vmatprep.subr.mxu0 0.0
    %575 = vmatpush2.msra.mxu0 0.0
    %576 = vmatprep.subr.mxu0 0.0
    %577 = vmatpush2.msra.mxu0 0.0
    %578 = vmatprep.mubr.f32.mxu0 0.0
    %579 = vmatmul.mubr.f32.gmra.mxu0 %v511
    %v580 = vpop.f32.mrf.mxu0
    %v581 = vadd.f32 0.0, %v580
    %v582 = vpop.f32.mrf.mxu0
    %583 = vdwg.mxu0
    %v584 = vmul.f32 %v418, %v418
    %v585 = vmul.f32 %v419, %v419
    %v586 = vmul.f32 %v420, %v420
    %v587 = vmul.f32 %v421, %v421
    %588 = vmatprep.subr.mxu0 0.0
    %589 = vmatpush1.msra.mxu0 0.0
    %590 = vmatprep.subr.mxu0 0.0
    %591 = vmatpush1.msra.mxu0 0.0
    %592 = vmatprep.subr.mxu0 0.0
    %593 = vmatpush1.msra.mxu0 0.0
    %594 = vmatprep.subr.mxu0 0.0
    %595 = vmatpush1.msra.mxu0 0.0
    %596 = vmatprep.subr.mxu0 0.0
    %597 = vmatpush1.msra.mxu0 0.0
    %598 = vmatprep.subr.mxu0 0.0
    %599 = vmatpush1.msra.mxu0 0.0
    %600 = vmatprep.subr.mxu0 0.0
    %601 = vmatpush1.msra.mxu0 0.0
    %602 = vmatprep.subr.mxu0 0.0
    %603 = vmatpush1.msra.mxu0 0.0
    %604 = vmatprep.subr.mxu0 0.0
    %605 = vmatpush1.msra.mxu0 0.0
    %606 = vmatprep.subr.mxu0 0.0
    %607 = vmatpush1.msra.mxu0 0.0
    %608 = vmatprep.subr.mxu0 0.0
    %609 = vmatpush1.msra.mxu0 0.0
    %610 = vmatprep.subr.mxu0 0.0
    %611 = vmatpush1.msra.mxu0 0.0
    %612 = vmatprep.subr.mxu0 0.0
    %613 = vmatpush1.msra.mxu0 %v587
    %614 = vmatprep.subr.mxu0 0.0
    %615 = vmatpush1.msra.mxu0 %v586
    %616 = vmatprep.subr.mxu0 0.0
    %617 = vmatpush1.msra.mxu0 %v585
    %618 = vmatprep.subr.mxu0 0.0
    %619 = vmatpush1.msra.mxu0 %v584
    %620 = vmatprep.subr.mxu0 0.0
    %621 = vmatpush2.msra.mxu0 0.0
    %622 = vmatprep.subr.mxu0 0.0
    %623 = vmatpush2.msra.mxu0 0.0
    %624 = vmatprep.subr.mxu0 0.0
    %625 = vmatpush2.msra.mxu0 0.0
    %626 = vmatprep.subr.mxu0 0.0
    %627 = vmatpush2.msra.mxu0 0.0
    %628 = vmatprep.subr.mxu0 0.0
    %629 = vmatpush2.msra.mxu0 0.0
    %630 = vmatprep.subr.mxu0 0.0
    %631 = vmatpush2.msra.mxu0 0.0
    %632 = vmatprep.subr.mxu0 0.0
    %633 = vmatpush2.msra.mxu0 0.0
    %634 = vmatprep.subr.mxu0 0.0
    %635 = vmatpush2.msra.mxu0 0.0
    %636 = vmatprep.subr.mxu0 0.0
    %637 = vmatpush2.msra.mxu0 0.0
    %638 = vmatprep.subr.mxu0 0.0
    %639 = vmatpush2.msra.mxu0 0.0
    %640 = vmatprep.subr.mxu0 0.0
    %641 = vmatpush2.msra.mxu0 0.0
    %642 = vmatprep.subr.mxu0 0.0
    %643 = vmatpush2.msra.mxu0 0.0
    %644 = vmatprep.subr.mxu0 0.0
    %645 = vmatpush2.msra.mxu0 0.0
    %646 = vmatprep.subr.mxu0 0.0
    %647 = vmatpush2.msra.mxu0 0.0
    %648 = vmatprep.subr.mxu0 0.0
    %649 = vmatpush2.msra.mxu0 0.0
    %650 = vmatprep.subr.mxu0 0.0
    %651 = vmatpush2.msra.mxu0 0.0
    %652 = vmatprep.mubr.f32.mxu0 0.0
    %653 = vmatmul.mubr.f32.gmra.mxu0 %v442
    %v654 = vpop.f32.mrf.mxu0
    %v655 = vadd.f32 0.0, %v654
    %v656 = vpop.f32.mrf.mxu0
    %657 = vdwg.mxu0
    %658 = vmatprep.subr.mxu0 0.0
    %659 = vmatpush1.msra.mxu0 %v437
    %660 = vmatprep.subr.mxu0 0.0
    %661 = vmatpush1.msra.mxu0 %v436
    %662 = vmatprep.subr.mxu0 0.0
    %663 = vmatpush1.msra.mxu0 %v435
    %664 = vmatprep.subr.mxu0 0.0
    %665 = vmatpush1.msra.mxu0 %v434
    %666 = vmatprep.subr.mxu0 0.0
    %667 = vmatpush1.msra.mxu0 %v433
    %668 = vmatprep.subr.mxu0 0.0
    %669 = vmatpush1.msra.mxu0 %v432
    %670 = vmatprep.subr.mxu0 0.0
    %671 = vmatpush1.msra.mxu0 %v431
    %672 = vmatprep.subr.mxu0 0.0
    %673 = vmatpush1.msra.mxu0 %v430
    %674 = vmatprep.subr.mxu0 0.0
    %675 = vmatpush1.msra.mxu0 %v429
    %676 = vmatprep.subr.mxu0 0.0
    %677 = vmatpush1.msra.mxu0 %v428
    %678 = vmatprep.subr.mxu0 0.0
    %679 = vmatpush1.msra.mxu0 %v427
    %680 = vmatprep.subr.mxu0 0.0
    %681 = vmatpush1.msra.mxu0 %v426
    %682 = vmatprep.subr.mxu0 0.0
    %683 = vmatpush1.msra.mxu0 %v425
    %684 = vmatprep.subr.mxu0 0.0
    %685 = vmatpush1.msra.mxu0 %v424
    %686 = vmatprep.subr.mxu0 0.0
    %687 = vmatpush1.msra.mxu0 %v423
    %688 = vmatprep.subr.mxu0 0.0
    %689 = vmatpush1.msra.mxu0 %v422
    %690 = vmatprep.subr.mxu0 0.0
    %691 = vmatpush2.msra.mxu0 0.0
    %692 = vmatprep.subr.mxu0 0.0
    %693 = vmatpush2.msra.mxu0 0.0
    %694 = vmatprep.subr.mxu0 0.0
    %695 = vmatpush2.msra.mxu0 0.0
    %696 = vmatprep.subr.mxu0 0.0
    %697 = vmatpush2.msra.mxu0 0.0
    %698 = vmatprep.subr.mxu0 0.0
    %699 = vmatpush2.msra.mxu0 0.0
    %700 = vmatprep.subr.mxu0 0.0
    %701 = vmatpush2.msra.mxu0 0.0
    %702 = vmatprep.subr.mxu0 0.0
    %703 = vmatpush2.msra.mxu0 0.0
    %704 = vmatprep.subr.mxu0 0.0
    %705 = vmatpush2.msra.mxu0 0.0
    %706 = vmatprep.subr.mxu0 0.0
    %707 = vmatpush2.msra.mxu0 0.0
    %708 = vmatprep.subr.mxu0 0.0
    %709 = vmatpush2.msra.mxu0 0.0
    %710 = vmatprep.subr.mxu0 0.0
    %711 = vmatpush2.msra.mxu0 0.0
    %712 = vmatprep.subr.mxu0 0.0
    %713 = vmatpush2.msra.mxu0 0.0
    %714 = vmatprep.subr.mxu0 0.0
    %715 = vmatpush2.msra.mxu0 0.0
    %716 = vmatprep.subr.mxu0 0.0
    %717 = vmatpush2.msra.mxu0 0.0
    %718 = vmatprep.subr.mxu0 0.0
    %719 = vmatpush2.msra.mxu0 0.0
    %720 = vmatprep.subr.mxu0 0.0
    %721 = vmatpush2.msra.mxu0 0.0
    %722 = vmatprep.mubr.f32.mxu0 0.0
    %723 = vmatmul.mubr.f32.gmra.mxu0 %v655
    %v724 = vpop.f32.mrf.mxu0
    %v725 = vadd.f32 0.0, %v724
    %v726 = vpop.f32.mrf.mxu0
    %727 = vdwg.mxu0
    %v728 = vmul.f32 %v581, %v581
    %v729 = vsub.f32 %v725, %v728
    %v730 = vadd.f32 %v729, 1e-05
    %v731 = vrsqrt.pop %v730
    %v732 = vmul.f32 %v438, %v731
    %v733 = vmul.f32 %v581, %v732
    %v734 = vsub.f32 %v439, %v733
    %v736 = vlaneseq
    %v737 = vshrl.u32 %v736, 7
    %v738 = vsub.s32 0, %v737
    %v739 = vrot.slane %v732, %v738
    %v741 = vmul.f32 %v418, %v739
    %v742 = vmul.f32 %v419, %v739
    %v743 = vmul.f32 %v420, %v739
    %v744 = vmul.f32 %v421, %v739
    %v746 = vlaneseq
    %v747 = vshrl.u32 %v746, 7
    %v748 = vsub.s32 0, %v747
    %v749 = vrot.slane %v734, %v748
    %v751 = vadd.f32 %v741, %v749
    %v752 = vadd.f32 %v742, %v749
    %v753 = vadd.f32 %v743, %v749
    %v754 = vadd.f32 %v744, %v749
    %v755 = vmax.f32 %v751, 0.0
    %v756 = vmax.f32 %v752, 0.0
    %v757 = vmax.f32 %v753, 0.0
    %v758 = vmax.f32 %v754, 0.0
    %v759 = vld [vmem:[#allocation8] sm:$0xff]
    %v760 = vld [vmem:[#allocation8 + $0x8] sm:$0xff]
    %v761 = vld [vmem:[#allocation8 + $0x10] sm:$0xff]
    %v762 = vld [vmem:[#allocation8 + $0x18] sm:$0xff]
    %v763 = vld [vmem:[#allocation8 + $0x20] sm:$0xff]
    %v764 = vld [vmem:[#allocation8 + $0x28] sm:$0xff]
    %v765 = vld [vmem:[#allocation8 + $0x30] sm:$0xff]
    %v766 = vld [vmem:[#allocation8 + $0x38] sm:$0xff]
    %v767 = vld [vmem:[#allocation8 + $0x40] sm:$0xff]
    %v768 = vld [vmem:[#allocation8 + $0x48] sm:$0xff]
    %v769 = vld [vmem:[#allocation8 + $0x50] sm:$0xff]
    %v770 = vld [vmem:[#allocation8 + $0x58] sm:$0xff]
    %v771 = vld [vmem:[#allocation8 + $0x60] sm:$0xff]
    %v772 = vld [vmem:[#allocation8 + $0x68] sm:$0xff]
    %v773 = vld [vmem:[#allocation8 + $0x70] sm:$0xff]
    %v774 = vld [vmem:[#allocation8 + $0x78] sm:$0xff]
    %775 = vmatprep.subr.mxu0 0.0
    %776 = vmatpush1.msra.mxu0 %v774
    %777 = vmatprep.subr.mxu0 0.0
    %778 = vmatpush1.msra.mxu0 %v773
    %779 = vmatprep.subr.mxu0 0.0
    %780 = vmatpush1.msra.mxu0 %v772
    %781 = vmatprep.subr.mxu0 0.0
    %782 = vmatpush1.msra.mxu0 %v771
    %783 = vmatprep.subr.mxu0 0.0
    %784 = vmatpush1.msra.mxu0 %v770
    %785 = vmatprep.subr.mxu0 0.0
    %786 = vmatpush1.msra.mxu0 %v769
    %787 = vmatprep.subr.mxu0 0.0
    %788 = vmatpush1.msra.mxu0 %v768
    %789 = vmatprep.subr.mxu0 0.0
    %790 = vmatpush1.msra.mxu0 %v767
    %791 = vmatprep.subr.mxu0 0.0
    %792 = vmatpush1.msra.mxu0 %v766
    %793 = vmatprep.subr.mxu0 0.0
    %794 = vmatpush1.msra.mxu0 %v765
    %795 = vmatprep.subr.mxu0 0.0
    %796 = vmatpush1.msra.mxu0 %v764
    %797 = vmatprep.subr.mxu0 0.0
    %798 = vmatpush1.msra.mxu0 %v763
    %799 = vmatprep.subr.mxu0 0.0
    %800 = vmatpush1.msra.mxu0 %v762
    %801 = vmatprep.subr.mxu0 0.0
    %802 = vmatpush1.msra.mxu0 %v761
    %803 = vmatprep.subr.mxu0 0.0
    %804 = vmatpush1.msra.mxu0 %v760
    %805 = vmatprep.subr.mxu0 0.0
    %806 = vmatpush1.msra.mxu0 %v759
    %807 = vmatprep.subr.mxu0 0.0
    %808 = vmatpush2.msra.mxu0 0.0
    %809 = vmatprep.subr.mxu0 0.0
    %810 = vmatpush2.msra.mxu0 0.0
    %811 = vmatprep.subr.mxu0 0.0
    %812 = vmatpush2.msra.mxu0 0.0
    %813 = vmatprep.subr.mxu0 0.0
    %814 = vmatpush2.msra.mxu0 0.0
    %815 = vmatprep.subr.mxu0 0.0
    %816 = vmatpush2.msra.mxu0 0.0
    %817 = vmatprep.subr.mxu0 0.0
    %818 = vmatpush2.msra.mxu0 0.0
    %819 = vmatprep.subr.mxu0 0.0
    %820 = vmatpush2.msra.mxu0 0.0
    %821 = vmatprep.subr.mxu0 0.0
    %822 = vmatpush2.msra.mxu0 0.0
    %823 = vmatprep.subr.mxu0 0.0
    %824 = vmatpush2.msra.mxu0 0.0
    %825 = vmatprep.subr.mxu0 0.0
    %826 = vmatpush2.msra.mxu0 0.0
    %827 = vmatprep.subr.mxu0 0.0
    %828 = vmatpush2.msra.mxu0 0.0
    %829 = vmatprep.subr.mxu0 0.0
    %830 = vmatpush2.msra.mxu0 0.0
    %831 = vmatprep.subr.mxu0 0.0
    %832 = vmatpush2.msra.mxu0 0.0
    %833 = vmatprep.subr.mxu0 0.0
    %834 = vmatpush2.msra.mxu0 0.0
    %835 = vmatprep.subr.mxu0 0.0
    %836 = vmatpush2.msra.mxu0 0.0
    %837 = vmatprep.subr.mxu0 0.0
    %838 = vmatpush2.msra.mxu0 0.0
    %839 = vmatprep.mubr.f32.mxu0 0.0
    %840 = vmatmul.mubr.f32.gmra.mxu0 %v755
    %v841 = vpop.f32.mrf.mxu0
    %v842 = vadd.f32 0.0, %v841
    %v843 = vpop.f32.mrf.mxu0
    %844 = vmatprep.mubr.f32.mxu0 0.0
    %845 = vmatmul.mubr.f32.gmra.mxu0 %v756
    %v846 = vpop.f32.mrf.mxu0
    %v847 = vadd.f32 0.0, %v846
    %v848 = vpop.f32.mrf.mxu0
    %849 = vmatprep.mubr.f32.mxu0 0.0
    %850 = vmatmul.mubr.f32.gmra.mxu0 %v757
    %v851 = vpop.f32.mrf.mxu0
    %v852 = vadd.f32 0.0, %v851
    %v853 = vpop.f32.mrf.mxu0
    %854 = vmatprep.mubr.f32.mxu0 0.0
    %855 = vmatmul.mubr.f32.gmra.mxu0 %v758
    %v856 = vpop.f32.mrf.mxu0
    %v857 = vadd.f32 0.0, %v856
    %v858 = vpop.f32.mrf.mxu0
    %859 = vdwg.mxu0
    %v860 = vld [vmem:[%s6] sm:$0x1]
    %v861 = vld [vmem:[%s7] sm:$0x1]
    %862 = vmatprep.subr.mxu0 0.0
    %863 = vmatpush1.msra.mxu0 0.0
    %864 = vmatprep.subr.mxu0 0.0
    %865 = vmatpush1.msra.mxu0 0.0
    %866 = vmatprep.subr.mxu0 0.0
    %867 = vmatpush1.msra.mxu0 0.0
    %868 = vmatprep.subr.mxu0 0.0
    %869 = vmatpush1.msra.mxu0 0.0
    %870 = vmatprep.subr.mxu0 0.0
    %871 = vmatpush1.msra.mxu0 0.0
    %872 = vmatprep.subr.mxu0 0.0
    %873 = vmatpush1.msra.mxu0 0.0
    %874 = vmatprep.subr.mxu0 0.0
    %875 = vmatpush1.msra.mxu0 0.0
    %876 = vmatprep.subr.mxu0 0.0
    %877 = vmatpush1.msra.mxu0 0.0
    %878 = vmatprep.subr.mxu0 0.0
    %879 = vmatpush1.msra.mxu0 0.0
    %880 = vmatprep.subr.mxu0 0.0
    %881 = vmatpush1.msra.mxu0 0.0
    %882 = vmatprep.subr.mxu0 0.0
    %883 = vmatpush1.msra.mxu0 0.0
    %884 = vmatprep.subr.mxu0 0.0
    %885 = vmatpush1.msra.mxu0 0.0
    %886 = vmatprep.subr.mxu0 0.0
    %887 = vmatpush1.msra.mxu0 %v857
    %888 = vmatprep.subr.mxu0 0.0
    %889 = vmatpush1.msra.mxu0 %v852
    %890 = vmatprep.subr.mxu0 0.0
    %891 = vmatpush1.msra.mxu0 %v847
    %892 = vmatprep.subr.mxu0 0.0
    %893 = vmatpush1.msra.mxu0 %v842
    %894 = vmatprep.subr.mxu0 0.0
    %895 = vmatpush2.msra.mxu0 0.0
    %896 = vmatprep.subr.mxu0 0.0
    %897 = vmatpush2.msra.mxu0 0.0
    %898 = vmatprep.subr.mxu0 0.0
    %899 = vmatpush2.msra.mxu0 0.0
    %900 = vmatprep.subr.mxu0 0.0
    %901 = vmatpush2.msra.mxu0 0.0
    %902 = vmatprep.subr.mxu0 0.0
    %903 = vmatpush2.msra.mxu0 0.0
    %904 = vmatprep.subr.mxu0 0.0
    %905 = vmatpush2.msra.mxu0 0.0
    %906 = vmatprep.subr.mxu0 0.0
    %907 = vmatpush2.msra.mxu0 0.0
    %908 = vmatprep.subr.mxu0 0.0
    %909 = vmatpush2.msra.mxu0 0.0
    %910 = vmatprep.subr.mxu0 0.0
    %911 = vmatpush2.msra.mxu0 0.0
    %912 = vmatprep.subr.mxu0 0.0
    %913 = vmatpush2.msra.mxu0 0.0
    %914 = vmatprep.subr.mxu0 0.0
    %915 = vmatpush2.msra.mxu0 0.0
    %916 = vmatprep.subr.mxu0 0.0
    %917 = vmatpush2.msra.mxu0 0.0
    %918 = vmatprep.subr.mxu0 0.0
    %919 = vmatpush2.msra.mxu0 0.0
    %920 = vmatprep.subr.mxu0 0.0
    %921 = vmatpush2.msra.mxu0 0.0
    %922 = vmatprep.subr.mxu0 0.0
    %923 = vmatpush2.msra.mxu0 0.0
    %924 = vmatprep.subr.mxu0 0.0
    %925 = vmatpush2.msra.mxu0 0.0
    %926 = vmatprep.mubr.f32.mxu0 0.0
    %927 = vmatmul.mubr.f32.gmra.mxu0 %v442
    %v928 = vpop.f32.mrf.mxu0
    %v929 = vadd.f32 0.0, %v928
    %v930 = vpop.f32.mrf.mxu0
    %931 = vdwg.mxu0
    %932 = vmatprep.subr.mxu0 0.0
    %933 = vmatpush1.msra.mxu0 %v437
    %934 = vmatprep.subr.mxu0 0.0
    %935 = vmatpush1.msra.mxu0 %v436
    %936 = vmatprep.subr.mxu0 0.0
    %937 = vmatpush1.msra.mxu0 %v435
    %938 = vmatprep.subr.mxu0 0.0
    %939 = vmatpush1.msra.mxu0 %v434
    %940 = vmatprep.subr.mxu0 0.0
    %941 = vmatpush1.msra.mxu0 %v433
    %942 = vmatprep.subr.mxu0 0.0
    %943 = vmatpush1.msra.mxu0 %v432
    %944 = vmatprep.subr.mxu0 0.0
    %945 = vmatpush1.msra.mxu0 %v431
    %946 = vmatprep.subr.mxu0 0.0
    %947 = vmatpush1.msra.mxu0 %v430
    %948 = vmatprep.subr.mxu0 0.0
    %949 = vmatpush1.msra.mxu0 %v429
    %950 = vmatprep.subr.mxu0 0.0
    %951 = vmatpush1.msra.mxu0 %v428
    %952 = vmatprep.subr.mxu0 0.0
    %953 = vmatpush1.msra.mxu0 %v427
    %954 = vmatprep.subr.mxu0 0.0
    %955 = vmatpush1.msra.mxu0 %v426
    %956 = vmatprep.subr.mxu0 0.0
    %957 = vmatpush1.msra.mxu0 %v425
    %958 = vmatprep.subr.mxu0 0.0
    %959 = vmatpush1.msra.mxu0 %v424
    %960 = vmatprep.subr.mxu0 0.0
    %961 = vmatpush1.msra.mxu0 %v423
    %962 = vmatprep.subr.mxu0 0.0
    %963 = vmatpush1.msra.mxu0 %v422
    %964 = vmatprep.subr.mxu0 0.0
    %965 = vmatpush2.msra.mxu0 0.0
    %966 = vmatprep.subr.mxu0 0.0
    %967 = vmatpush2.msra.mxu0 0.0
    %968 = vmatprep.subr.mxu0 0.0
    %969 = vmatpush2.msra.mxu0 0.0
    %970 = vmatprep.subr.mxu0 0.0
    %971 = vmatpush2.msra.mxu0 0.0
    %972 = vmatprep.subr.mxu0 0.0
    %973 = vmatpush2.msra.mxu0 0.0
    %974 = vmatprep.subr.mxu0 0.0
    %975 = vmatpush2.msra.mxu0 0.0
    %976 = vmatprep.subr.mxu0 0.0
    %977 = vmatpush2.msra.mxu0 0.0
    %978 = vmatprep.subr.mxu0 0.0
    %979 = vmatpush2.msra.mxu0 0.0
    %980 = vmatprep.subr.mxu0 0.0
    %981 = vmatpush2.msra.mxu0 0.0
    %982 = vmatprep.subr.mxu0 0.0
    %983 = vmatpush2.msra.mxu0 0.0
    %984 = vmatprep.subr.mxu0 0.0
    %985 = vmatpush2.msra.mxu0 0.0
    %986 = vmatprep.subr.mxu0 0.0
    %987 = vmatpush2.msra.mxu0 0.0
    %988 = vmatprep.subr.mxu0 0.0
    %989 = vmatpush2.msra.mxu0 0.0
    %990 = vmatprep.subr.mxu0 0.0
    %991 = vmatpush2.msra.mxu0 0.0
    %992 = vmatprep.subr.mxu0 0.0
    %993 = vmatpush2.msra.mxu0 0.0
    %994 = vmatprep.subr.mxu0 0.0
    %995 = vmatpush2.msra.mxu0 0.0
    %996 = vmatprep.mubr.f32.mxu0 0.0
    %997 = vmatmul.mubr.f32.gmra.mxu0 %v929
    %v998 = vpop.f32.mrf.mxu0
    %v999 = vadd.f32 0.0, %v998
    %v1000 = vpop.f32.mrf.mxu0
    %1001 = vdwg.mxu0
    %v1002 = vmul.f32 %v842, %v842
    %v1003 = vmul.f32 %v847, %v847
    %v1004 = vmul.f32 %v852, %v852
    %v1005 = vmul.f32 %v857, %v857
    %1006 = vmatprep.subr.mxu0 0.0
    %1007 = vmatpush1.msra.mxu0 0.0
    %1008 = vmatprep.subr.mxu0 0.0
    %1009 = vmatpush1.msra.mxu0 0.0
    %1010 = vmatprep.subr.mxu0 0.0
    %1011 = vmatpush1.msra.mxu0 0.0
    %1012 = vmatprep.subr.mxu0 0.0
    %1013 = vmatpush1.msra.mxu0 0.0
    %1014 = vmatprep.subr.mxu0 0.0
    %1015 = vmatpush1.msra.mxu0 0.0
    %1016 = vmatprep.subr.mxu0 0.0
    %1017 = vmatpush1.msra.mxu0 0.0
    %1018 = vmatprep.subr.mxu0 0.0
    %1019 = vmatpush1.msra.mxu0 0.0
    %1020 = vmatprep.subr.mxu0 0.0
    %1021 = vmatpush1.msra.mxu0 0.0
    %1022 = vmatprep.subr.mxu0 0.0
    %1023 = vmatpush1.msra.mxu0 0.0
    %1024 = vmatprep.subr.mxu0 0.0
    %1025 = vmatpush1.msra.mxu0 0.0
    %1026 = vmatprep.subr.mxu0 0.0
    %1027 = vmatpush1.msra.mxu0 0.0
    %1028 = vmatprep.subr.mxu0 0.0
    %1029 = vmatpush1.msra.mxu0 0.0
    %1030 = vmatprep.subr.mxu0 0.0
    %1031 = vmatpush1.msra.mxu0 %v1005
    %1032 = vmatprep.subr.mxu0 0.0
    %1033 = vmatpush1.msra.mxu0 %v1004
    %1034 = vmatprep.subr.mxu0 0.0
    %1035 = vmatpush1.msra.mxu0 %v1003
    %1036 = vmatprep.subr.mxu0 0.0
    %1037 = vmatpush1.msra.mxu0 %v1002
    %1038 = vmatprep.subr.mxu0 0.0
    %1039 = vmatpush2.msra.mxu0 0.0
    %1040 = vmatprep.subr.mxu0 0.0
    %1041 = vmatpush2.msra.mxu0 0.0
    %1042 = vmatprep.subr.mxu0 0.0
    %1043 = vmatpush2.msra.mxu0 0.0
    %1044 = vmatprep.subr.mxu0 0.0
    %1045 = vmatpush2.msra.mxu0 0.0
    %1046 = vmatprep.subr.mxu0 0.0
    %1047 = vmatpush2.msra.mxu0 0.0
    %1048 = vmatprep.subr.mxu0 0.0
    %1049 = vmatpush2.msra.mxu0 0.0
    %1050 = vmatprep.subr.mxu0 0.0
    %1051 = vmatpush2.msra.mxu0 0.0
    %1052 = vmatprep.subr.mxu0 0.0
    %1053 = vmatpush2.msra.mxu0 0.0
    %1054 = vmatprep.subr.mxu0 0.0
    %1055 = vmatpush2.msra.mxu0 0.0
    %1056 = vmatprep.subr.mxu0 0.0
    %1057 = vmatpush2.msra.mxu0 0.0
    %1058 = vmatprep.subr.mxu0 0.0
    %1059 = vmatpush2.msra.mxu0 0.0
    %1060 = vmatprep.subr.mxu0 0.0
    %1061 = vmatpush2.msra.mxu0 0.0
    %1062 = vmatprep.subr.mxu0 0.0
    %1063 = vmatpush2.msra.mxu0 0.0
    %1064 = vmatprep.subr.mxu0 0.0
    %1065 = vmatpush2.msra.mxu0 0.0
    %1066 = vmatprep.subr.mxu0 0.0
    %1067 = vmatpush2.msra.mxu0 0.0
    %1068 = vmatprep.subr.mxu0 0.0
    %1069 = vmatpush2.msra.mxu0 0.0
    %1070 = vmatprep.mubr.f32.mxu0 0.0
    %1071 = vmatmul.mubr.f32.gmra.mxu0 %v442
    %v1072 = vpop.f32.mrf.mxu0
    %v1073 = vadd.f32 0.0, %v1072
    %v1074 = vpop.f32.mrf.mxu0
    %1075 = vdwg.mxu0
    %1076 = vmatprep.subr.mxu0 0.0
    %1077 = vmatpush1.msra.mxu0 %v437
    %1078 = vmatprep.subr.mxu0 0.0
    %1079 = vmatpush1.msra.mxu0 %v436
    %1080 = vmatprep.subr.mxu0 0.0
    %1081 = vmatpush1.msra.mxu0 %v435
    %1082 = vmatprep.subr.mxu0 0.0
    %1083 = vmatpush1.msra.mxu0 %v434
    %1084 = vmatprep.subr.mxu0 0.0
    %1085 = vmatpush1.msra.mxu0 %v433
    %1086 = vmatprep.subr.mxu0 0.0
    %1087 = vmatpush1.msra.mxu0 %v432
    %1088 = vmatprep.subr.mxu0 0.0
    %1089 = vmatpush1.msra.mxu0 %v431
    %1090 = vmatprep.subr.mxu0 0.0
    %1091 = vmatpush1.msra.mxu0 %v430
    %1092 = vmatprep.subr.mxu0 0.0
    %1093 = vmatpush1.msra.mxu0 %v429
    %1094 = vmatprep.subr.mxu0 0.0
    %1095 = vmatpush1.msra.mxu0 %v428
    %1096 = vmatprep.subr.mxu0 0.0
    %1097 = vmatpush1.msra.mxu0 %v427
    %1098 = vmatprep.subr.mxu0 0.0
    %1099 = vmatpush1.msra.mxu0 %v426
    %1100 = vmatprep.subr.mxu0 0.0
    %1101 = vmatpush1.msra.mxu0 %v425
    %1102 = vmatprep.subr.mxu0 0.0
    %1103 = vmatpush1.msra.mxu0 %v424
    %1104 = vmatprep.subr.mxu0 0.0
    %1105 = vmatpush1.msra.mxu0 %v423
    %1106 = vmatprep.subr.mxu0 0.0
    %1107 = vmatpush1.msra.mxu0 %v422
    %1108 = vmatprep.subr.mxu0 0.0
    %1109 = vmatpush2.msra.mxu0 0.0
    %1110 = vmatprep.subr.mxu0 0.0
    %1111 = vmatpush2.msra.mxu0 0.0
    %1112 = vmatprep.subr.mxu0 0.0
    %1113 = vmatpush2.msra.mxu0 0.0
    %1114 = vmatprep.subr.mxu0 0.0
    %1115 = vmatpush2.msra.mxu0 0.0
    %1116 = vmatprep.subr.mxu0 0.0
    %1117 = vmatpush2.msra.mxu0 0.0
    %1118 = vmatprep.subr.mxu0 0.0
    %1119 = vmatpush2.msra.mxu0 0.0
    %1120 = vmatprep.subr.mxu0 0.0
    %1121 = vmatpush2.msra.mxu0 0.0
    %1122 = vmatprep.subr.mxu0 0.0
    %1123 = vmatpush2.msra.mxu0 0.0
    %1124 = vmatprep.subr.mxu0 0.0
    %1125 = vmatpush2.msra.mxu0 0.0
    %1126 = vmatprep.subr.mxu0 0.0
    %1127 = vmatpush2.msra.mxu0 0.0
    %1128 = vmatprep.subr.mxu0 0.0
    %1129 = vmatpush2.msra.mxu0 0.0
    %1130 = vmatprep.subr.mxu0 0.0
    %1131 = vmatpush2.msra.mxu0 0.0
    %1132 = vmatprep.subr.mxu0 0.0
    %1133 = vmatpush2.msra.mxu0 0.0
    %1134 = vmatprep.subr.mxu0 0.0
    %1135 = vmatpush2.msra.mxu0 0.0
    %1136 = vmatprep.subr.mxu0 0.0
    %1137 = vmatpush2.msra.mxu0 0.0
    %1138 = vmatprep.subr.mxu0 0.0
    %1139 = vmatpush2.msra.mxu0 0.0
    %1140 = vmatprep.mubr.f32.mxu0 0.0
    %1141 = vmatmul.mubr.f32.gmra.mxu0 %v1073
    %v1142 = vpop.f32.mrf.mxu0
    %v1143 = vadd.f32 0.0, %v1142
    %v1144 = vpop.f32.mrf.mxu0
    %1145 = vdwg.mxu0
    %v1146 = vmul.f32 %v999, %v999
    %v1147 = vsub.f32 %v1143, %v1146
    %v1148 = vadd.f32 %v1147, 1e-05
    %v1149 = vrsqrt.pop %v1148
    %v1150 = vmul.f32 %v860, %v1149
    %v1151 = vmul.f32 %v999, %v1150
    %v1152 = vsub.f32 %v861, %v1151
    %v1154 = vlaneseq
    %v1155 = vshrl.u32 %v1154, 7
    %v1156 = vsub.s32 0, %v1155
    %v1157 = vrot.slane %v1150, %v1156
    %v1159 = vmul.f32 %v842, %v1157
    %v1160 = vmul.f32 %v847, %v1157
    %v1161 = vmul.f32 %v852, %v1157
    %v1162 = vmul.f32 %v857, %v1157
    %v1164 = vlaneseq
    %v1165 = vshrl.u32 %v1164, 7
    %v1166 = vsub.s32 0, %v1165
    %v1167 = vrot.slane %v1152, %v1166
    %v1169 = vadd.f32 %v1159, %v1167
    %v1170 = vadd.f32 %v1160, %v1167
    %v1171 = vadd.f32 %v1161, %v1167
    %v1172 = vadd.f32 %v1162, %v1167
    %v1173 = vadd.f32 %v85, %v1169
    %v1174 = vadd.f32 %v86, %v1170
    %v1175 = vadd.f32 %v87, %v1171
    %v1176 = vadd.f32 %v88, %v1172
    %1177 = vst [vmem:[#allocation11] sm:$0xff] %v1173
    %1178 = vst [vmem:[#allocation11 + $0x8] sm:$0xff] %v1174
    %1179 = vst [vmem:[#allocation11 + $0x10] sm:$0xff] %v1175
    %1180 = vst [vmem:[#allocation11 + $0x18] sm:$0xff] %v1176
    // Predicated region
    $region50: #{tpu_custom_call.1} parent=1 // pred_check
      _
    $region51: #{tpu_custom_call.1} parent=1 // pred_check_branch
      %1182 = sbr.rel (0) target = $region53
    $region52: #{tpu_custom_call.1} parent=1 // pred_region
      %s1184 = ssub.s32 512, 512
      %1185 = vsyncadd [#allocation5], %s1184
      %s1186 = sshll.u32 [#allocation11], 4
      %s1187 = int_to_ptr.vmem [resolvable:$true] %s1186
      %1192 = dma.vmem_to_hbm [thread:$0]  %s1187, 512, %s8, [#allocation5], 128, 128, 8
    $region53: #{tpu_custom_call.1} parent=1 // pred_fallthru
      _
    // Predicated region
    $region54: #{tpu_custom_call.1} parent=1 // pred_check
      _
    $region55: #{tpu_custom_call.1} parent=1 // pred_check_branch
      %1194 = sbr.rel (0) target = $region57
    $region56: #{tpu_custom_call.1} parent=1 // pred_region
      %1195 = dma.done [#allocation5], 512
    $region57: #{tpu_custom_call.1} parent=1 // pred_fallthru
      _
    %1196 = vsyncpa [#allocation4], 1
    %1197 = vsyncpa [#allocation7], 1
    %1198 = vsyncpa [#allocation10], 1
    %1199 = vsyncpa [#allocation5], 1

</llo_original>
